<compile_context>
chip_gen: v7x
topology: tpu7x:2x2x1
jax: 0.10.0
libtpu: 0.0.40
codegen_flags: <defaults>
</compile_context>

<pallas_src>
import functools

import jax
import jax.numpy as jnp
from jax.experimental import pallas as pl
from jax.experimental.pallas import tpu as pltpu


def mlp_softmax_kernel(x_ref, w1_ref, b1_ref, w2_ref, b2_ref, w3_ref, b3_ref,
                       o_ref, *, num_classes):
    # Layer 1: Linear (bf16 x bf16 -> f32 acc) + ReLU
    h = jnp.dot(x_ref[...], w1_ref[...],
                preferred_element_type=jnp.float32) + b1_ref[...]
    h = jnp.maximum(h, 0.0)
    # Layer 2: Linear + ReLU
    h = jnp.dot(h.astype(jnp.bfloat16), w2_ref[...],
                preferred_element_type=jnp.float32) + b2_ref[...]
    h = jnp.maximum(h, 0.0)
    # Layer 3 (output, padded to 128 lanes): Linear + ReLU
    h = jnp.dot(h.astype(jnp.bfloat16), w3_ref[...],
                preferred_element_type=jnp.float32) + b3_ref[...]
    h = jnp.maximum(h, 0.0)
    # Mask the padded class lanes before softmax so they contribute 0 prob.
    col = jax.lax.broadcasted_iota(jnp.int32, h.shape, 1)
    h = jnp.where(col < num_classes, h, -1e30)
    # Numerically stable softmax over the class (lane) axis == torch dim=1.
    m = jnp.max(h, axis=-1, keepdims=True)
    e = jnp.exp(h - m)
    s = jnp.sum(e, axis=-1, keepdims=True)
    o_ref[...] = (e * pl.reciprocal(s, approx=True)).astype(o_ref.dtype)


def mlp_forward(x, params, *, tile_b=512):
    """params = (w1, b1, w2, b2, w3, b3); weights are [in, out] (transposed vs
    PyTorch), biases are [1, out].  Returns softmax probabilities [B, C]."""
    w1, b1, w2, b2, w3, b3 = params
    B, F = x.shape
    H1 = w1.shape[1]
    H2 = w2.shape[1]
    C = w3.shape[1]

    # Lane-dense output slab: pad class dim up to a multiple of 128.
    C_PAD = 128 * pl.cdiv(C, 128)
    w3p = jnp.zeros((w3.shape[0], C_PAD), w3.dtype).at[:, :C].set(w3)
    b3p = jnp.zeros((1, C_PAD), b3.dtype).at[:, :C].set(b3)

    # Batch tiling: TILE_B in the ~512 range, but never larger than the
    # (sublane-rounded) batch; pad B up to a multiple of TILE_B.
    TILE_B = min(tile_b, 8 * pl.cdiv(B, 8))
    B_pad = TILE_B * pl.cdiv(B, TILE_B)
    if B_pad != B:
        x = jnp.pad(x, ((0, B_pad - B), (0, 0)))

    # bf16 operands for the MXU (f32 accumulation inside the kernel).
    x_bf = x.astype(jnp.bfloat16)
    w1_bf = w1.astype(jnp.bfloat16)
    w2_bf = w2.astype(jnp.bfloat16)
    w3_bf = w3p.astype(jnp.bfloat16)

    grid = (B_pad // TILE_B,)

    # Weights / biases: constant index_map -> stay resident in VMEM.
    const = lambda i: (0, 0)
    in_specs = [
        pl.BlockSpec((TILE_B, F), lambda i: (i, 0)),       # x tile
        pl.BlockSpec((F, H1), const),                       # w1
        pl.BlockSpec((1, H1), const),                       # b1
        pl.BlockSpec((H1, H2), const),                      # w2
        pl.BlockSpec((1, H2), const),                       # b2
        pl.BlockSpec((H2, C_PAD), const),                   # w3 (padded)
        pl.BlockSpec((1, C_PAD), const),                    # b3 (padded)
    ]
    out_specs = pl.BlockSpec((TILE_B, C_PAD), lambda i: (i, 0))

    flops = 2 * B_pad * (F * H1 + H1 * H2 + H2 * C_PAD)
    bytes_accessed = (
        B_pad * F * 2                                   # x (bf16)
        + (F * H1 + H1 * H2 + H2 * C_PAD) * 2           # weights (bf16)
        + (H1 + H2 + C_PAD) * 4                         # biases (f32)
        + B_pad * C_PAD * 4                             # output (f32)
    )
    cost = pl.CostEstimate(flops=flops,
                           transcendentals=B_pad * C_PAD,
                           bytes_accessed=bytes_accessed)

    kernel = functools.partial(mlp_softmax_kernel, num_classes=C)

    out_padded = pl.pallas_call(
        kernel,
        grid=grid,
        in_specs=in_specs,
        out_specs=out_specs,
        out_shape=jax.ShapeDtypeStruct((B_pad, C_PAD), jnp.float32),
        compiler_params=pltpu.CompilerParams(
            dimension_semantics=("parallel",),       # 2-TC sharding on v7x
            vmem_limit_bytes=32 * 1024 * 1024,       # safe on 64 MiB v7x parts
        ),
        cost_estimate=cost,
    )(x_bf, w1_bf, b1, w2_bf, b2, w3_bf, b3p)

    return out_padded[:B, :C]
    # TODO(synk): if num_nodes/num_input are ever scaled to >=2048, add a
    # K-tiling grid axis with a VMEM f32 accumulator instead of keeping full
    # [in, out] weights resident.


def init_params(key, num_input, num_nodes, num_classes):
    """Deterministic init mimicking nn.Linear default (uniform +/- 1/sqrt(fan_in))."""
    dims = [(num_input, num_nodes), (num_nodes, num_nodes),
            (num_nodes, num_classes)]
    params = []
    for (fan_in, fan_out) in dims:
        key, kw, kb = jax.random.split(key, 3)
        bound = 1.0 / jnp.sqrt(fan_in)
        w = jax.random.uniform(kw, (fan_in, fan_out), jnp.float32,
                               minval=-bound, maxval=bound)
        b = jax.random.uniform(kb, (1, fan_out), jnp.float32,
                               minval=-bound, maxval=bound)
        params += [w, b]
    return tuple(params)


def mlp_reference_bf16(x, params):
    """Reference matching the kernel's bf16-matmul / f32-accumulate numerics."""
    w1, b1, w2, b2, w3, b3 = params
    h = jnp.dot(x.astype(jnp.bfloat16), w1.astype(jnp.bfloat16),
                preferred_element_type=jnp.float32) + b1
    h = jnp.maximum(h, 0.0)
    h = jnp.dot(h.astype(jnp.bfloat16), w2.astype(jnp.bfloat16),
                preferred_element_type=jnp.float32) + b2
    h = jnp.maximum(h, 0.0)
    h = jnp.dot(h.astype(jnp.bfloat16), w3.astype(jnp.bfloat16),
                preferred_element_type=jnp.float32) + b3
    h = jnp.maximum(h, 0.0)
    return jax.nn.softmax(h, axis=1)


def mlp_reference_f32(x, params):
    """Pure f32 reference matching the original PyTorch module."""
    w1, b1, w2, b2, w3, b3 = params
    h = jnp.maximum(x @ w1 + b1, 0.0)
    h = jnp.maximum(h @ w2 + b2, 0.0)
    h = jnp.maximum(h @ w3 + b3, 0.0)
    return jax.nn.softmax(h, axis=1)


if __name__ == "__main__":
    # Network(num_input=32, num_layers=3, num_classes=10, num_nodes=64,
    #         activation=nn.ReLU(), use_batch_norm=False)
    num_input, num_nodes, num_classes = 32, 64, 10
    batch = 520   # exercises batch padding (-> 1024) and a 2-step grid

    key = jax.random.PRNGKey(0)
    key, kx = jax.random.split(key)
    x = jax.random.normal(kx, (batch, num_input), jnp.float32)
    params = init_params(key, num_input, num_nodes, num_classes)

    out = mlp_forward(x, params)
    out = jax.block_until_ready(out)

    ref_bf16 = mlp_reference_bf16(x, params)
    ref_f32 = mlp_reference_f32(x, params)

    assert out.shape == (batch, num_classes)
    assert jnp.allclose(out, ref_bf16, atol=5e-3, rtol=5e-3), \
        "mismatch vs bf16-matmul reference"
    assert jnp.allclose(out, ref_f32, atol=5e-2, rtol=5e-2), \
        "mismatch vs f32 reference"
    assert jnp.allclose(jnp.sum(out, axis=1), 1.0, atol=1e-2), \
        "rows not normalized"

    print("KERNEL_OK")
</pallas_src>

<mosaic_0001>
module attributes {stable_mosaic.version = 11 : i64} {
  func.func @mlp_softmax_kernel(%arg0: i32, %arg1: memref<512x32xbf16, #tpu.memory_space<vmem>>, %arg2: memref<32x64xbf16, #tpu.memory_space<vmem>>, %arg3: memref<1x64xf32, #tpu.memory_space<vmem>>, %arg4: memref<64x64xbf16, #tpu.memory_space<vmem>>, %arg5: memref<1x64xf32, #tpu.memory_space<vmem>>, %arg6: memref<64x128xbf16, #tpu.memory_space<vmem>>, %arg7: memref<1x128xf32, #tpu.memory_space<vmem>>, %arg8: memref<512x128xf32, #tpu.memory_space<vmem>>) attributes {dimension_semantics = [#tpu.dimension_semantics<parallel>], iteration_bounds = array<i64: 2>, scalar_prefetch = 0 : i64, scratch_operands = 0 : i64, tpu.core_type = #tpu.core_type<tc>, window_params = [{transform_indices = @transform_0, window_bounds = array<i64: 512, 32>}, {pipeline_mode = #tpu.pipeline_mode<synchronous>, transform_indices = @transform_1, window_bounds = array<i64: 32, 64>}, {pipeline_mode = #tpu.pipeline_mode<synchronous>, transform_indices = @transform_2, window_bounds = array<i64: 1, 64>}, {pipeline_mode = #tpu.pipeline_mode<synchronous>, transform_indices = @transform_3, window_bounds = array<i64: 64, 64>}, {pipeline_mode = #tpu.pipeline_mode<synchronous>, transform_indices = @transform_4, window_bounds = array<i64: 1, 64>}, {pipeline_mode = #tpu.pipeline_mode<synchronous>, transform_indices = @transform_5, window_bounds = array<i64: 64, 128>}, {pipeline_mode = #tpu.pipeline_mode<synchronous>, transform_indices = @transform_6, window_bounds = array<i64: 1, 128>}, {transform_indices = @transform_7, window_bounds = array<i64: 512, 128>}]} {
    %c0 = arith.constant 0 : index
    %c0_0 = arith.constant 0 : index
    %0 = vector.load %arg1[%c0, %c0_0] : memref<512x32xbf16, #tpu.memory_space<vmem>>, vector<512x32xbf16>
    %c0_1 = arith.constant 0 : index
    %c0_2 = arith.constant 0 : index
    %1 = vector.load %arg2[%c0_1, %c0_2] : memref<32x64xbf16, #tpu.memory_space<vmem>>, vector<32x64xbf16>
    %cst = arith.constant dense<0.000000e+00> : vector<512x64xf32>
    %2 = tpu.matmul %0, %1, %cst {dimension_numbers = #tpu.dot_dimension_numbers<[1], [0], [0], [1], [0, 0, 1, 1], [], []>} : vector<512x32xbf16>, vector<32x64xbf16>, vector<512x64xf32> -> vector<512x64xf32>
    %c0_3 = arith.constant 0 : index
    %c0_4 = arith.constant 0 : index
    %3 = vector.load %arg3[%c0_3, %c0_4] : memref<1x64xf32, #tpu.memory_space<vmem>>, vector<1x64xf32>
    %4 = vector.broadcast %3 : vector<1x64xf32> to vector<512x64xf32>
    %5 = arith.addf %2, %4 : vector<512x64xf32>
    %cst_5 = arith.constant 0.000000e+00 : f32
    %6 = vector.broadcast %cst_5 : f32 to vector<512x64xf32>
    %7 = arith.maximumf %5, %6 : vector<512x64xf32>
    %8 = arith.truncf %7 : vector<512x64xf32> to vector<512x64xbf16>
    %c0_6 = arith.constant 0 : index
    %c0_7 = arith.constant 0 : index
    %9 = vector.load %arg4[%c0_6, %c0_7] : memref<64x64xbf16, #tpu.memory_space<vmem>>, vector<64x64xbf16>
    %cst_8 = arith.constant dense<0.000000e+00> : vector<512x64xf32>
    %10 = tpu.matmul %8, %9, %cst_8 {dimension_numbers = #tpu.dot_dimension_numbers<[1], [0], [0], [1], [0, 0, 1, 1], [], []>} : vector<512x64xbf16>, vector<64x64xbf16>, vector<512x64xf32> -> vector<512x64xf32>
    %c0_9 = arith.constant 0 : index
    %c0_10 = arith.constant 0 : index
    %11 = vector.load %arg5[%c0_9, %c0_10] : memref<1x64xf32, #tpu.memory_space<vmem>>, vector<1x64xf32>
    %12 = vector.broadcast %11 : vector<1x64xf32> to vector<512x64xf32>
    %13 = arith.addf %10, %12 : vector<512x64xf32>
    %cst_11 = arith.constant 0.000000e+00 : f32
    %14 = vector.broadcast %cst_11 : f32 to vector<512x64xf32>
    %15 = arith.maximumf %13, %14 : vector<512x64xf32>
    %16 = arith.truncf %15 : vector<512x64xf32> to vector<512x64xbf16>
    %c0_12 = arith.constant 0 : index
    %c0_13 = arith.constant 0 : index
    %17 = vector.load %arg6[%c0_12, %c0_13] : memref<64x128xbf16, #tpu.memory_space<vmem>>, vector<64x128xbf16>
    %cst_14 = arith.constant dense<0.000000e+00> : vector<512x128xf32>
    %18 = tpu.matmul %16, %17, %cst_14 {dimension_numbers = #tpu.dot_dimension_numbers<[1], [0], [0], [1], [0, 0, 1, 1], [], []>} : vector<512x64xbf16>, vector<64x128xbf16>, vector<512x128xf32> -> vector<512x128xf32>
    %c0_15 = arith.constant 0 : index
    %c0_16 = arith.constant 0 : index
    %19 = vector.load %arg7[%c0_15, %c0_16] : memref<1x128xf32, #tpu.memory_space<vmem>>, vector<1x128xf32>
    %20 = vector.broadcast %19 : vector<1x128xf32> to vector<512x128xf32>
    %21 = arith.addf %18, %20 : vector<512x128xf32>
    %cst_17 = arith.constant 0.000000e+00 : f32
    %22 = vector.broadcast %cst_17 : f32 to vector<512x128xf32>
    %23 = arith.maximumf %21, %22 : vector<512x128xf32>
    %24 = tpu.iota {dimensions = array<i32: 1>} : vector<512x128xi32>
    %c10_i32 = arith.constant 10 : i32
    %25 = vector.broadcast %c10_i32 : i32 to vector<512x128xi32>
    %26 = arith.cmpi slt, %24, %25 : vector<512x128xi32>
    %cst_18 = arith.constant -1.000000e+30 : f32
    %27 = vector.broadcast %cst_18 : f32 to vector<512x128xf32>
    %28 = arith.select %26, %23, %27 : vector<512x128xi1>, vector<512x128xf32>
    %cst_19 = arith.constant dense<0xFF800000> : vector<512xf32>
    %29 = vector.multi_reduction <maximumf>, %28, %cst_19 [1] : vector<512x128xf32> to vector<512xf32>
    %30 = vector.shape_cast %29 : vector<512xf32> to vector<512x1xf32>
    %31 = vector.broadcast %30 : vector<512x1xf32> to vector<512x128xf32>
    %32 = arith.subf %28, %31 : vector<512x128xf32>
    %33 = math.exp %32 : vector<512x128xf32>
    %cst_20 = arith.constant dense<0.000000e+00> : vector<512xf32>
    %34 = vector.multi_reduction <add>, %33, %cst_20 [1] : vector<512x128xf32> to vector<512xf32>
    %35 = vector.shape_cast %34 : vector<512xf32> to vector<512x1xf32>
    %36 = tpu.reciprocal %35 {approx = true} : vector<512x1xf32> -> vector<512x1xf32>
    %37 = vector.broadcast %36 : vector<512x1xf32> to vector<512x128xf32>
    %38 = arith.mulf %33, %37 : vector<512x128xf32>
    %c0_21 = arith.constant 0 : index
    %c0_22 = arith.constant 0 : index
    %39 = vector.load %arg8[%c0_21, %c0_22] : memref<512x128xf32, #tpu.memory_space<vmem>>, vector<512x128xf32>
    tpu.vector_store %arg8[%c0_21, %c0_22], %38 {strides = array<i32>} : memref<512x128xf32, #tpu.memory_space<vmem>>, vector<512x128xf32>,
    return
  }
  func.func @transform_0(%arg0: i32) -> (i32, i32) {
    %c0_i32 = arith.constant 0 : i32
    %c0_i32_0 = arith.constant 0 : i32
    return %arg0, %c0_i32 : i32, i32
  }
  func.func @transform_1(%arg0: i32) -> (i32, i32) {
    %c0_i32 = arith.constant 0 : i32
    %c0_i32_0 = arith.constant 0 : i32
    %c0_i32_1 = arith.constant 0 : i32
    return %c0_i32, %c0_i32_0 : i32, i32
  }
  func.func @transform_2(%arg0: i32) -> (i32, i32) {
    %c0_i32 = arith.constant 0 : i32
    %c0_i32_0 = arith.constant 0 : i32
    %c0_i32_1 = arith.constant 0 : i32
    return %c0_i32, %c0_i32_0 : i32, i32
  }
  func.func @transform_3(%arg0: i32) -> (i32, i32) {
    %c0_i32 = arith.constant 0 : i32
    %c0_i32_0 = arith.constant 0 : i32
    %c0_i32_1 = arith.constant 0 : i32
    return %c0_i32, %c0_i32_0 : i32, i32
  }
  func.func @transform_4(%arg0: i32) -> (i32, i32) {
    %c0_i32 = arith.constant 0 : i32
    %c0_i32_0 = arith.constant 0 : i32
    %c0_i32_1 = arith.constant 0 : i32
    return %c0_i32, %c0_i32_0 : i32, i32
  }
  func.func @transform_5(%arg0: i32) -> (i32, i32) {
    %c0_i32 = arith.constant 0 : i32
    %c0_i32_0 = arith.constant 0 : i32
    %c0_i32_1 = arith.constant 0 : i32
    return %c0_i32, %c0_i32_0 : i32, i32
  }
  func.func @transform_6(%arg0: i32) -> (i32, i32) {
    %c0_i32 = arith.constant 0 : i32
    %c0_i32_0 = arith.constant 0 : i32
    %c0_i32_1 = arith.constant 0 : i32
    return %c0_i32, %c0_i32_0 : i32, i32
  }
  func.func @transform_7(%arg0: i32) -> (i32, i32) {
    %c0_i32 = arith.constant 0 : i32
    %c0_i32_0 = arith.constant 0 : i32
    return %arg0, %c0_i32 : i32, i32
  }
}

</mosaic_0001>

<llo_original>
// kernel: tpu_custom_call.1
$region0: #{tpu_custom_call.1}
  #allocation0 [shape = 'u32[]', space=smem, size = 0x4, offset = 0x4, fixed_abs, tag = 'smem constant byte address 0x4 - core index']
  #allocation1 [shape = 'u32[144,128]{1,0:T(1,128)}', space=vmem, size = 0x12000, scoped, tag = 'internal scratch']
  %s0 = inlined_call_operand.vmem [shape: bf16[1024,32], index: 0, kind: input, shape index: {}]
  %s1 = inlined_call_operand.vmem [shape: bf16[32,64], index: 1, kind: input, shape index: {}]
  %s2 = inlined_call_operand.vmem [shape: f32[1,64], index: 2, kind: input, shape index: {}]
  %s3 = inlined_call_operand.vmem [shape: bf16[64,64], index: 3, kind: input, shape index: {}]
  %s4 = inlined_call_operand.vmem [shape: f32[1,64], index: 4, kind: input, shape index: {}]
  %s5 = inlined_call_operand.vmem [shape: bf16[64,128], index: 5, kind: input, shape index: {}]
  %s6 = inlined_call_operand.vmem [shape: f32[1,128], index: 6, kind: input, shape index: {}]
  %s7 = inlined_call_operand.hbm [shape: f32[1024,128], index: 7, kind: output, shape index: {}]
  %s8 = sld [smem:[#allocation0]]
  $region61: #{tpu_custom_call.1} parent=0
    _
  %s10 = ssub.s32 1, %s8
  %s11 = scalar_select 0, %s10, %s8
  $region1: #{tpu_custom_call.1} parent=0
    #allocation2 [shape = 'u8[524288]{0}', space=vmem, size = 0x80000, scoped, tag = 'output window, operand 0']
    #allocation3 [shape = 's32[2]{0}', space=sflag, size = 0x8, scoped, tag = 'scoped memory for tpu_custom_call.1']
    %12 = vsyncpa [#allocation3], 0
    %s13 = scalar_lea.sflag [#allocation3], 1
    %14 = vsyncpa %s13, 0
    loop: start=0, step=1, limit=4
    $region2: #{tpu_custom_call.1} parent=1 // loop_pre_header
      _
    $region3: #{tpu_custom_call.1} parent=1 // loop_header
      %s16 = sphi 0, %s20
      %p17 = scmp.ge.s32.totalorder %s16, 4
      %s26 = sphi 0, %s28
      %s29 = sphi 0, %s26
      %s30 = sphi 0, %s29
      %s46 = sphi 0, %s30
      %s50 = sphi 0, %s50
      %s52 = sphi 0, %s50
      %s53 = sphi 0, %s52
      %s67 = sphi 0, %s53
      %s71 = sphi 0, %s71
      %s73 = sphi 0, %s71
      %s74 = sphi 0, %s73
      %s88 = sphi 0, %s74
      %s92 = sphi 0, %s92
      %s94 = sphi 0, %s92
      %s95 = sphi 0, %s94
      %s109 = sphi 0, %s95
      %s113 = sphi 0, %s113
      %s115 = sphi 0, %s113
      %s116 = sphi 0, %s115
      %s130 = sphi 0, %s116
      %s134 = sphi 0, %s134
      %s136 = sphi 0, %s134
      %s137 = sphi 0, %s136
      %s151 = sphi 0, %s137
      %s155 = sphi 0, %s155
      %s157 = sphi 0, %s155
      %s158 = sphi 0, %s157
      %s172 = sphi 0, %s158
      %s178 = sphi 0, %s180
      %s181 = sphi 0, %s178
      %s182 = sphi 0, %s181
      %s198 = sphi 0, %s182
    $region4: #{tpu_custom_call.1} parent=1 // loop_header_branch
      %19 = sbr.rel (%p17) target = $region8
    $region5: #{tpu_custom_call.1} parent=1 // loop_body
      %s21 = ssub.s32 %s16, 1
      %s22 = ssub.s32 %s16, 2
      %s23 = sadd.s32 %s16, 1
      %s24 = ssub.s32 %s16, %s23
      %p25 = scmp.eq.s32.totalorder %s24, 0
      %s27 = sadd.s32 %s26, 1
      %s28 = scalar_select %p25, %s26, %s27
      %p31 = pneg %p25
      %p32 = scmp.eq.s32.totalorder %s16, 1
      %p33 = por %p31, %p32
      %p34 = scmp.ne.s32.totalorder %s26, %s29
      %p35 = scmp.eq.s32.totalorder %s16, 0
      %p36 = por %p34, %p35
      %p37 = scmp.ne.s32.totalorder %s26, %s29
      %p38 = scmp.eq.s32.totalorder %s21, 1
      %p39 = por %p37, %p38
      %p40 = scmp.ne.s32.totalorder %s29, %s30
      %p41 = scmp.eq.s32.totalorder %s21, 0
      %p42 = por %p40, %p41
      %p43 = scmp.ne.s32.totalorder %s29, %s30
      %p44 = scmp.eq.s32.totalorder %s22, 1
      %p45 = por %p43, %p44
      %p47 = scmp.ne.s32.totalorder %s30, %s46
      %p48 = scmp.eq.s32.totalorder %s22, 0
      %p49 = por %p47, %p48
      %s51 = sadd.s32 %s50, 1
      %p54 = scmp.eq.s32.totalorder %s16, 1
      %p55 = scmp.ne.s32.totalorder %s50, %s52
      %p56 = scmp.eq.s32.totalorder %s16, 0
      %p57 = por %p55, %p56
      %p58 = scmp.ne.s32.totalorder %s50, %s52
      %p59 = scmp.eq.s32.totalorder %s21, 1
      %p60 = por %p58, %p59
      %p61 = scmp.ne.s32.totalorder %s52, %s53
      %p62 = scmp.eq.s32.totalorder %s21, 0
      %p63 = por %p61, %p62
      %p64 = scmp.ne.s32.totalorder %s52, %s53
      %p65 = scmp.eq.s32.totalorder %s22, 1
      %p66 = por %p64, %p65
      %p68 = scmp.ne.s32.totalorder %s53, %s67
      %p69 = scmp.eq.s32.totalorder %s22, 0
      %p70 = por %p68, %p69
      %s72 = sadd.s32 %s71, 1
      %p75 = scmp.eq.s32.totalorder %s16, 1
      %p76 = scmp.ne.s32.totalorder %s71, %s73
      %p77 = scmp.eq.s32.totalorder %s16, 0
      %p78 = por %p76, %p77
      %p79 = scmp.ne.s32.totalorder %s71, %s73
      %p80 = scmp.eq.s32.totalorder %s21, 1
      %p81 = por %p79, %p80
      %p82 = scmp.ne.s32.totalorder %s73, %s74
      %p83 = scmp.eq.s32.totalorder %s21, 0
      %p84 = por %p82, %p83
      %p85 = scmp.ne.s32.totalorder %s73, %s74
      %p86 = scmp.eq.s32.totalorder %s22, 1
      %p87 = por %p85, %p86
      %p89 = scmp.ne.s32.totalorder %s74, %s88
      %p90 = scmp.eq.s32.totalorder %s22, 0
      %p91 = por %p89, %p90
      %s93 = sadd.s32 %s92, 1
      %p96 = scmp.eq.s32.totalorder %s16, 1
      %p97 = scmp.ne.s32.totalorder %s92, %s94
      %p98 = scmp.eq.s32.totalorder %s16, 0
      %p99 = por %p97, %p98
      %p100 = scmp.ne.s32.totalorder %s92, %s94
      %p101 = scmp.eq.s32.totalorder %s21, 1
      %p102 = por %p100, %p101
      %p103 = scmp.ne.s32.totalorder %s94, %s95
      %p104 = scmp.eq.s32.totalorder %s21, 0
      %p105 = por %p103, %p104
      %p106 = scmp.ne.s32.totalorder %s94, %s95
      %p107 = scmp.eq.s32.totalorder %s22, 1
      %p108 = por %p106, %p107
      %p110 = scmp.ne.s32.totalorder %s95, %s109
      %p111 = scmp.eq.s32.totalorder %s22, 0
      %p112 = por %p110, %p111
      %s114 = sadd.s32 %s113, 1
      %p117 = scmp.eq.s32.totalorder %s16, 1
      %p118 = scmp.ne.s32.totalorder %s113, %s115
      %p119 = scmp.eq.s32.totalorder %s16, 0
      %p120 = por %p118, %p119
      %p121 = scmp.ne.s32.totalorder %s113, %s115
      %p122 = scmp.eq.s32.totalorder %s21, 1
      %p123 = por %p121, %p122
      %p124 = scmp.ne.s32.totalorder %s115, %s116
      %p125 = scmp.eq.s32.totalorder %s21, 0
      %p126 = por %p124, %p125
      %p127 = scmp.ne.s32.totalorder %s115, %s116
      %p128 = scmp.eq.s32.totalorder %s22, 1
      %p129 = por %p127, %p128
      %p131 = scmp.ne.s32.totalorder %s116, %s130
      %p132 = scmp.eq.s32.totalorder %s22, 0
      %p133 = por %p131, %p132
      %s135 = sadd.s32 %s134, 1
      %p138 = scmp.eq.s32.totalorder %s16, 1
      %p139 = scmp.ne.s32.totalorder %s134, %s136
      %p140 = scmp.eq.s32.totalorder %s16, 0
      %p141 = por %p139, %p140
      %p142 = scmp.ne.s32.totalorder %s134, %s136
      %p143 = scmp.eq.s32.totalorder %s21, 1
      %p144 = por %p142, %p143
      %p145 = scmp.ne.s32.totalorder %s136, %s137
      %p146 = scmp.eq.s32.totalorder %s21, 0
      %p147 = por %p145, %p146
      %p148 = scmp.ne.s32.totalorder %s136, %s137
      %p149 = scmp.eq.s32.totalorder %s22, 1
      %p150 = por %p148, %p149
      %p152 = scmp.ne.s32.totalorder %s137, %s151
      %p153 = scmp.eq.s32.totalorder %s22, 0
      %p154 = por %p152, %p153
      %s156 = sadd.s32 %s155, 1
      %p159 = scmp.eq.s32.totalorder %s16, 1
      %p160 = scmp.ne.s32.totalorder %s155, %s157
      %p161 = scmp.eq.s32.totalorder %s16, 0
      %p162 = por %p160, %p161
      %p163 = scmp.ne.s32.totalorder %s155, %s157
      %p164 = scmp.eq.s32.totalorder %s21, 1
      %p165 = por %p163, %p164
      %p166 = scmp.ne.s32.totalorder %s157, %s158
      %p167 = scmp.eq.s32.totalorder %s21, 0
      %p168 = por %p166, %p167
      %p169 = scmp.ne.s32.totalorder %s157, %s158
      %p170 = scmp.eq.s32.totalorder %s22, 1
      %p171 = por %p169, %p170
      %p173 = scmp.ne.s32.totalorder %s158, %s172
      %p174 = scmp.eq.s32.totalorder %s22, 0
      %p175 = por %p173, %p174
      %s176 = ssub.s32 %s16, %s23
      %p177 = scmp.eq.s32.totalorder %s176, 0
      %s179 = sadd.s32 %s178, 1
      %s180 = scalar_select %p177, %s178, %s179
      %p183 = pneg %p177
      %p184 = scmp.eq.s32.totalorder %s16, 1
      %p185 = por %p183, %p184
      %p186 = scmp.ne.s32.totalorder %s178, %s181
      %p187 = scmp.eq.s32.totalorder %s16, 0
      %p188 = por %p186, %p187
      %p189 = scmp.ne.s32.totalorder %s178, %s181
      %p190 = scmp.eq.s32.totalorder %s21, 1
      %p191 = por %p189, %p190
      %p192 = scmp.ne.s32.totalorder %s181, %s182
      %p193 = scmp.eq.s32.totalorder %s21, 0
      %p194 = por %p192, %p193
      %p195 = scmp.ne.s32.totalorder %s181, %s182
      %p196 = scmp.eq.s32.totalorder %s22, 1
      %p197 = por %p195, %p196
      %p199 = scmp.ne.s32.totalorder %s182, %s198
      %p200 = scmp.eq.s32.totalorder %s22, 0
      %p201 = por %p199, %p200
      %p202 = scmp.le.s32.totalorder 1, %s16
      %p203 = scmp.lt.s32.totalorder %s16, 3
      %p204 = pnand %p202, %p203
      %p205 = pneg %p204
      // Predicated region
      $region9: #{tpu_custom_call.1} parent=5 // pred_check
        _
      $region10: #{tpu_custom_call.1} parent=5 // pred_check_branch
        %207 = sbr.rel (%p204) target = $region12
      $region11: #{tpu_custom_call.1} parent=5 // pred_region
        %s208 = ssub.s32 %s16, 1
        // Predicated region
        $region13: #{tpu_custom_call.1} parent=11 // pred_check
          %p209 = pneg %p63
        $region14: #{tpu_custom_call.1} parent=11 // pred_check_branch
          %211 = sbr.rel (%p209) target = $region16
        $region15: #{tpu_custom_call.1} parent=11 // pred_region
          _
        $region16: #{tpu_custom_call.1} parent=11 // pred_fallthru
          _
        // Predicated region
        $region17: #{tpu_custom_call.1} parent=11 // pred_check
          %p212 = pneg %p84
        $region18: #{tpu_custom_call.1} parent=11 // pred_check_branch
          %214 = sbr.rel (%p212) target = $region20
        $region19: #{tpu_custom_call.1} parent=11 // pred_region
          _
        $region20: #{tpu_custom_call.1} parent=11 // pred_fallthru
          _
        // Predicated region
        $region21: #{tpu_custom_call.1} parent=11 // pred_check
          %p215 = pneg %p105
        $region22: #{tpu_custom_call.1} parent=11 // pred_check_branch
          %217 = sbr.rel (%p215) target = $region24
        $region23: #{tpu_custom_call.1} parent=11 // pred_region
          _
        $region24: #{tpu_custom_call.1} parent=11 // pred_fallthru
          _
        // Predicated region
        $region25: #{tpu_custom_call.1} parent=11 // pred_check
          %p218 = pneg %p126
        $region26: #{tpu_custom_call.1} parent=11 // pred_check_branch
          %220 = sbr.rel (%p218) target = $region28
        $region27: #{tpu_custom_call.1} parent=11 // pred_region
          _
        $region28: #{tpu_custom_call.1} parent=11 // pred_fallthru
          _
        // Predicated region
        $region29: #{tpu_custom_call.1} parent=11 // pred_check
          %p221 = pneg %p147
        $region30: #{tpu_custom_call.1} parent=11 // pred_check_branch
          %223 = sbr.rel (%p221) target = $region32
        $region31: #{tpu_custom_call.1} parent=11 // pred_region
          _
        $region32: #{tpu_custom_call.1} parent=11 // pred_fallthru
          _
        // Predicated region
        $region33: #{tpu_custom_call.1} parent=11 // pred_check
          %p224 = pneg %p168
        $region34: #{tpu_custom_call.1} parent=11 // pred_check_branch
          %226 = sbr.rel (%p224) target = $region36
        $region35: #{tpu_custom_call.1} parent=11 // pred_region
          _
        $region36: #{tpu_custom_call.1} parent=11 // pred_fallthru
          _
      $region12: #{tpu_custom_call.1} parent=5 // pred_fallthru
        _
      %p227 = scmp.lt.s32.totalorder %s16, 2
      // Predicated region
      $region37: #{tpu_custom_call.1} parent=5 // pred_check
        %p228 = pneg %p227
      $region38: #{tpu_custom_call.1} parent=5 // pred_check_branch
        %230 = sbr.rel (%p228) target = $region40
      $region39: #{tpu_custom_call.1} parent=5 // pred_region
        // Predicated region
        $region41: #{tpu_custom_call.1} parent=39 // pred_check
          %p231 = pneg %p36
        $region42: #{tpu_custom_call.1} parent=39 // pred_check_branch
          %233 = sbr.rel (%p231) target = $region44
        $region43: #{tpu_custom_call.1} parent=39 // pred_region
          %s234 = smul.u32 64, %s16
          %p235 = scmp.lt.s32.totalorder %s234, 127
          %s236 = scalar_select %p235, %s234, 127
          %s237 = smul.addr %s236, 4
          %s238 = scalar_lea.vmem %s0, %s237
          %s239 = smul.u32 64, %s16
        $region44: #{tpu_custom_call.1} parent=39 // pred_fallthru
          _
      $region40: #{tpu_custom_call.1} parent=5 // pred_fallthru
        _
      %p240 = scmp.le.s32.totalorder 1, %s16
      %p241 = scmp.lt.s32.totalorder %s16, 3
      %p242 = pnand %p240, %p241
      %p243 = pneg %p242
      // Predicated region
      $region45: #{tpu_custom_call.1} parent=5 // pred_check
        _
      $region46: #{tpu_custom_call.1} parent=5 // pred_check_branch
        %245 = sbr.rel (%p242) target = $region48
      $region47: #{tpu_custom_call.1} parent=5 // pred_region
        %s246 = ssub.s32 %s16, 1
        %s247 = smul.u32 64, %s21
        %p248 = scmp.lt.s32.totalorder %s247, 127
        %s249 = scalar_select %p248, %s247, 127
        %s250 = smul.addr %s249, 4
        %s251 = scalar_lea.vmem %s0, %s250
        %p252 = pneg %p42
        %p253 = pneg %p39
        %p254 = pneg %p63
        %p255 = pneg %p60
        %p256 = pneg %p84
        %p257 = pneg %p81
        %p258 = pneg %p105
        %p259 = pneg %p102
        %p260 = pneg %p126
        %p261 = pneg %p123
        %p262 = pneg %p147
        %p263 = pneg %p144
        %p264 = pneg %p168
        %p265 = pneg %p165
        %p266 = pneg %p194
        %p267 = pneg %p191
        %s268 = sand.u32 %s181, 1
        %s269 = scalar_lea.sflag [#allocation3], %s268
        %s270 = sand.u32 %s181, 1
        %s271 = smul.addr %s270, 512
        %s272 = scalar_lea.vmem [#allocation2], %s271
        %s273 = smul.u32 64, %s21
        %p274 = scmp.lt.s32.totalorder %s273, 127
        %s275 = scalar_select %p274, %s273, 127
        %s276 = smul.addr %s275, 4
        %s277 = scalar_lea.vmem %s0, %s276
        %s278 = smul.u32 64, %s21
        %s279 = smul.u32 64, %s21
        %v281 = vld [vmem:[%s277] sm:$0xf]
        %v282 = vld [vmem:[%s277 + $0x4] sm:$0xf]
        %v283 = vld [vmem:[%s277 + $0x8] sm:$0xf]
        %v284 = vld [vmem:[%s277 + $0xc] sm:$0xf]
        %v285 = vld [vmem:[%s277 + $0x10] sm:$0xf]
        %v286 = vld [vmem:[%s277 + $0x14] sm:$0xf]
        %v287 = vld [vmem:[%s277 + $0x18] sm:$0xf]
        %v288 = vld [vmem:[%s277 + $0x1c] sm:$0xf]
        %v289 = vld [vmem:[%s277 + $0x20] sm:$0xf]
        %v290 = vld [vmem:[%s277 + $0x24] sm:$0xf]
        %v291 = vld [vmem:[%s277 + $0x28] sm:$0xf]
        %v292 = vld [vmem:[%s277 + $0x2c] sm:$0xf]
        %v293 = vld [vmem:[%s277 + $0x30] sm:$0xf]
        %v294 = vld [vmem:[%s277 + $0x34] sm:$0xf]
        %v295 = vld [vmem:[%s277 + $0x38] sm:$0xf]
        %v296 = vld [vmem:[%s277 + $0x3c] sm:$0xf]
        %v297 = vld [vmem:[%s277 + $0x40] sm:$0xf]
        %v298 = vld [vmem:[%s277 + $0x44] sm:$0xf]
        %v299 = vld [vmem:[%s277 + $0x48] sm:$0xf]
        %v300 = vld [vmem:[%s277 + $0x4c] sm:$0xf]
        %v301 = vld [vmem:[%s277 + $0x50] sm:$0xf]
        %v302 = vld [vmem:[%s277 + $0x54] sm:$0xf]
        %v303 = vld [vmem:[%s277 + $0x58] sm:$0xf]
        %v304 = vld [vmem:[%s277 + $0x5c] sm:$0xf]
        %v305 = vld [vmem:[%s277 + $0x60] sm:$0xf]
        %v306 = vld [vmem:[%s277 + $0x64] sm:$0xf]
        %v307 = vld [vmem:[%s277 + $0x68] sm:$0xf]
        %v308 = vld [vmem:[%s277 + $0x6c] sm:$0xf]
        %v309 = vld [vmem:[%s277 + $0x70] sm:$0xf]
        %v310 = vld [vmem:[%s277 + $0x74] sm:$0xf]
        %v311 = vld [vmem:[%s277 + $0x78] sm:$0xf]
        %v312 = vld [vmem:[%s277 + $0x7c] sm:$0xf]
        %v313 = vld [vmem:[%s277 + $0x80] sm:$0xf]
        %v314 = vld [vmem:[%s277 + $0x84] sm:$0xf]
        %v315 = vld [vmem:[%s277 + $0x88] sm:$0xf]
        %v316 = vld [vmem:[%s277 + $0x8c] sm:$0xf]
        %v317 = vld [vmem:[%s277 + $0x90] sm:$0xf]
        %v318 = vld [vmem:[%s277 + $0x94] sm:$0xf]
        %v319 = vld [vmem:[%s277 + $0x98] sm:$0xf]
        %v320 = vld [vmem:[%s277 + $0x9c] sm:$0xf]
        %v321 = vld [vmem:[%s277 + $0xa0] sm:$0xf]
        %v322 = vld [vmem:[%s277 + $0xa4] sm:$0xf]
        %v323 = vld [vmem:[%s277 + $0xa8] sm:$0xf]
        %v324 = vld [vmem:[%s277 + $0xac] sm:$0xf]
        %v325 = vld [vmem:[%s277 + $0xb0] sm:$0xf]
        %v326 = vld [vmem:[%s277 + $0xb4] sm:$0xf]
        %v327 = vld [vmem:[%s277 + $0xb8] sm:$0xf]
        %v328 = vld [vmem:[%s277 + $0xbc] sm:$0xf]
        %v329 = vld [vmem:[%s277 + $0xc0] sm:$0xf]
        %v330 = vld [vmem:[%s277 + $0xc4] sm:$0xf]
        %v331 = vld [vmem:[%s277 + $0xc8] sm:$0xf]
        %v332 = vld [vmem:[%s277 + $0xcc] sm:$0xf]
        %v333 = vld [vmem:[%s277 + $0xd0] sm:$0xf]
        %v334 = vld [vmem:[%s277 + $0xd4] sm:$0xf]
        %v335 = vld [vmem:[%s277 + $0xd8] sm:$0xf]
        %v336 = vld [vmem:[%s277 + $0xdc] sm:$0xf]
        %v337 = vld [vmem:[%s277 + $0xe0] sm:$0xf]
        %v338 = vld [vmem:[%s277 + $0xe4] sm:$0xf]
        %v339 = vld [vmem:[%s277 + $0xe8] sm:$0xf]
        %v340 = vld [vmem:[%s277 + $0xec] sm:$0xf]
        %v341 = vld [vmem:[%s277 + $0xf0] sm:$0xf]
        %v342 = vld [vmem:[%s277 + $0xf4] sm:$0xf]
        %v343 = vld [vmem:[%s277 + $0xf8] sm:$0xf]
        %v344 = vld [vmem:[%s277 + $0xfc] sm:$0xf]
        %v345 = vld [vmem:[%s1] sm:$0xf]
        %v346 = vld [vmem:[%s1 + $0x4] sm:$0xf]
        %v347 = vld [vmem:[%s1 + $0x8] sm:$0xf]
        %v348 = vld [vmem:[%s1 + $0xc] sm:$0xf]
        %v349 = vld [vmem:[%s2] sm:$0x1]
        %v351 = vlaneseq
        %v352 = vshrl.u32 %v351, 7
        %v353 = vsub.s32 0, %v352
        %v354 = vrot.slane %v349, %v353
        %v420 = vunpack.c.l.b16 %v281
        %v421 = vunpack.c.l.b16 %v282
        %v422 = vunpack.c.l.b16 %v283
        %v423 = vunpack.c.l.b16 %v284
        %v424 = vunpack.c.l.b16 %v285
        %v425 = vunpack.c.l.b16 %v286
        %v426 = vunpack.c.l.b16 %v287
        %v427 = vunpack.c.l.b16 %v288
        %v428 = vunpack.c.l.b16 %v289
        %v429 = vunpack.c.l.b16 %v290
        %v430 = vunpack.c.l.b16 %v291
        %v431 = vunpack.c.l.b16 %v292
        %v432 = vunpack.c.l.b16 %v293
        %v433 = vunpack.c.l.b16 %v294
        %v434 = vunpack.c.l.b16 %v295
        %v435 = vunpack.c.l.b16 %v296
        %v436 = vunpack.c.l.b16 %v297
        %v437 = vunpack.c.l.b16 %v298
        %v438 = vunpack.c.l.b16 %v299
        %v439 = vunpack.c.l.b16 %v300
        %v440 = vunpack.c.l.b16 %v301
        %v441 = vunpack.c.l.b16 %v302
        %v442 = vunpack.c.l.b16 %v303
        %v443 = vunpack.c.l.b16 %v304
        %v444 = vunpack.c.l.b16 %v305
        %v445 = vunpack.c.l.b16 %v306
        %v446 = vunpack.c.l.b16 %v307
        %v447 = vunpack.c.l.b16 %v308
        %v448 = vunpack.c.l.b16 %v309
        %v449 = vunpack.c.l.b16 %v310
        %v450 = vunpack.c.l.b16 %v311
        %v451 = vunpack.c.l.b16 %v312
        %v452 = vunpack.c.l.b16 %v313
        %v453 = vunpack.c.l.b16 %v314
        %v454 = vunpack.c.l.b16 %v315
        %v455 = vunpack.c.l.b16 %v316
        %v456 = vunpack.c.l.b16 %v317
        %v457 = vunpack.c.l.b16 %v318
        %v458 = vunpack.c.l.b16 %v319
        %v459 = vunpack.c.l.b16 %v320
        %v460 = vunpack.c.l.b16 %v321
        %v461 = vunpack.c.l.b16 %v322
        %v462 = vunpack.c.l.b16 %v323
        %v463 = vunpack.c.l.b16 %v324
        %v464 = vunpack.c.l.b16 %v325
        %v465 = vunpack.c.l.b16 %v326
        %v466 = vunpack.c.l.b16 %v327
        %v467 = vunpack.c.l.b16 %v328
        %v468 = vunpack.c.l.b16 %v329
        %v469 = vunpack.c.l.b16 %v330
        %v470 = vunpack.c.l.b16 %v331
        %v471 = vunpack.c.l.b16 %v332
        %v472 = vunpack.c.l.b16 %v333
        %v473 = vunpack.c.l.b16 %v334
        %v474 = vunpack.c.l.b16 %v335
        %v475 = vunpack.c.l.b16 %v336
        %v476 = vunpack.c.l.b16 %v337
        %v477 = vunpack.c.l.b16 %v338
        %v478 = vunpack.c.l.b16 %v339
        %v479 = vunpack.c.l.b16 %v340
        %v480 = vunpack.c.l.b16 %v341
        %v481 = vunpack.c.l.b16 %v342
        %v482 = vunpack.c.l.b16 %v343
        %v483 = vunpack.c.l.b16 %v344
        %v484 = vpack.c.b16 %v421, %v420
        %v485 = vpack.c.b16 %v423, %v422
        %v486 = vpack.c.b16 %v425, %v424
        %v487 = vpack.c.b16 %v427, %v426
        %v488 = vpack.c.b16 %v429, %v428
        %v489 = vpack.c.b16 %v431, %v430
        %v490 = vpack.c.b16 %v433, %v432
        %v491 = vpack.c.b16 %v435, %v434
        %v492 = vpack.c.b16 %v437, %v436
        %v493 = vpack.c.b16 %v439, %v438
        %v494 = vpack.c.b16 %v441, %v440
        %v495 = vpack.c.b16 %v443, %v442
        %v496 = vpack.c.b16 %v445, %v444
        %v497 = vpack.c.b16 %v447, %v446
        %v498 = vpack.c.b16 %v449, %v448
        %v499 = vpack.c.b16 %v451, %v450
        %v500 = vpack.c.b16 %v453, %v452
        %v501 = vpack.c.b16 %v455, %v454
        %v502 = vpack.c.b16 %v457, %v456
        %v503 = vpack.c.b16 %v459, %v458
        %v504 = vpack.c.b16 %v461, %v460
        %v505 = vpack.c.b16 %v463, %v462
        %v506 = vpack.c.b16 %v465, %v464
        %v507 = vpack.c.b16 %v467, %v466
        %v508 = vpack.c.b16 %v469, %v468
        %v509 = vpack.c.b16 %v471, %v470
        %v510 = vpack.c.b16 %v473, %v472
        %v511 = vpack.c.b16 %v475, %v474
        %v512 = vpack.c.b16 %v477, %v476
        %v513 = vpack.c.b16 %v479, %v478
        %v514 = vpack.c.b16 %v481, %v480
        %v515 = vpack.c.b16 %v483, %v482
        %v520 = vunpack.c.l.b16 %v345
        %v521 = vunpack.c.l.b16 %v346
        %v522 = vunpack.c.l.b16 %v347
        %v523 = vunpack.c.l.b16 %v348
        %v524 = vpack.c.b16 %v521, %v520
        %v525 = vpack.c.b16 %v523, %v522
        %vm528 = vcmask 261120
        %v530 = vsel %vm528, %v484, 0
        %v533 = vsel %vm528, %v485, 0
        %v536 = vsel %vm528, %v486, 0
        %v539 = vsel %vm528, %v487, 0
        %v542 = vsel %vm528, %v488, 0
        %v545 = vsel %vm528, %v489, 0
        %v548 = vsel %vm528, %v490, 0
        %v551 = vsel %vm528, %v491, 0
        %v554 = vsel %vm528, %v492, 0
        %v557 = vsel %vm528, %v493, 0
        %v560 = vsel %vm528, %v494, 0
        %v563 = vsel %vm528, %v495, 0
        %v566 = vsel %vm528, %v496, 0
        %v569 = vsel %vm528, %v497, 0
        %v572 = vsel %vm528, %v498, 0
        %v575 = vsel %vm528, %v499, 0
        %v578 = vsel %vm528, %v500, 0
        %v581 = vsel %vm528, %v501, 0
        %v584 = vsel %vm528, %v502, 0
        %v587 = vsel %vm528, %v503, 0
        %v590 = vsel %vm528, %v504, 0
        %v593 = vsel %vm528, %v505, 0
        %v596 = vsel %vm528, %v506, 0
        %v599 = vsel %vm528, %v507, 0
        %v602 = vsel %vm528, %v508, 0
        %v605 = vsel %vm528, %v509, 0
        %v608 = vsel %vm528, %v510, 0
        %v611 = vsel %vm528, %v511, 0
        %v614 = vsel %vm528, %v512, 0
        %v617 = vsel %vm528, %v513, 0
        %v620 = vsel %vm528, %v514, 0
        %v623 = vsel %vm528, %v515, 0
        %625 = vmatprep.subr.bf16.mxu0 0
        %626 = vmatpush1.bf16.msra.mxu0 %v524
        %627 = vmatprep.subr.bf16.mxu0 0
        %628 = vmatpush1.bf16.msra.mxu0 %v525
        %629 = vmatprep.subr.bf16.mxu0 0
        %630 = vmatpush1.bf16.msra.mxu0 0
        %631 = vmatprep.subr.bf16.mxu0 0
        %632 = vmatpush1.bf16.msra.mxu0 0
        %633 = vmatprep.subr.bf16.mxu0 0
        %634 = vmatpush1.bf16.msra.mxu0 0
        %635 = vmatprep.subr.bf16.mxu0 0
        %636 = vmatpush1.bf16.msra.mxu0 0
        %637 = vmatprep.subr.bf16.mxu0 0
        %638 = vmatpush1.bf16.msra.mxu0 0
        %639 = vmatprep.subr.bf16.mxu0 0
        %640 = vmatpush1.bf16.msra.mxu0 0
        %641 = vmatprep.subr.bf16.mxu0 0
        %642 = vmatpush1.bf16.msra.mxu0 0
        %643 = vmatprep.subr.bf16.mxu0 0
        %644 = vmatpush1.bf16.msra.mxu0 0
        %645 = vmatprep.subr.bf16.mxu0 0
        %646 = vmatpush1.bf16.msra.mxu0 0
        %647 = vmatprep.subr.bf16.mxu0 0
        %648 = vmatpush1.bf16.msra.mxu0 0
        %649 = vmatprep.subr.bf16.mxu0 0
        %650 = vmatpush1.bf16.msra.mxu0 0
        %651 = vmatprep.subr.bf16.mxu0 0
        %652 = vmatpush1.bf16.msra.mxu0 0
        %653 = vmatprep.subr.bf16.mxu0 0
        %654 = vmatpush1.bf16.msra.mxu0 0
        %655 = vmatprep.subr.bf16.mxu0 0
        %656 = vmatpush1.bf16.msra.mxu0 0
        %657 = vmatprep.mubr.bf16.mxu0 0
        %658 = vmatmul.mubr.bf16.gmra.mrb[0].mxu0 %v530
        %v659 = vpop.f32.mrb[0].mxu0
        %v660 = vadd.f32 %v354, %v659
        %v661 = vpop.f32.mrb[0].mxu0
        %v662 = vpop.f32.mrb[0].mxu0
        %v663 = vadd.f32 %v354, %v662
        %v664 = vpop.f32.mrb[0].mxu0
        %665 = vmatprep.mubr.bf16.mxu0 0
        %666 = vmatmul.mubr.bf16.gmra.mrb[0].mxu0 %v533
        %v667 = vpop.f32.mrb[0].mxu0
        %v668 = vadd.f32 %v354, %v667
        %v669 = vpop.f32.mrb[0].mxu0
        %v670 = vpop.f32.mrb[0].mxu0
        %v671 = vadd.f32 %v354, %v670
        %v672 = vpop.f32.mrb[0].mxu0
        %673 = vmatprep.mubr.bf16.mxu0 0
        %674 = vmatmul.mubr.bf16.gmra.mrb[0].mxu0 %v536
        %v675 = vpop.f32.mrb[0].mxu0
        %v676 = vadd.f32 %v354, %v675
        %v677 = vpop.f32.mrb[0].mxu0
        %v678 = vpop.f32.mrb[0].mxu0
        %v679 = vadd.f32 %v354, %v678
        %v680 = vpop.f32.mrb[0].mxu0
        %681 = vmatprep.mubr.bf16.mxu0 0
        %682 = vmatmul.mubr.bf16.gmra.mrb[0].mxu0 %v539
        %v683 = vpop.f32.mrb[0].mxu0
        %v684 = vadd.f32 %v354, %v683
        %v685 = vpop.f32.mrb[0].mxu0
        %v686 = vpop.f32.mrb[0].mxu0
        %v687 = vadd.f32 %v354, %v686
        %v688 = vpop.f32.mrb[0].mxu0
        %689 = vmatprep.mubr.bf16.mxu0 0
        %690 = vmatmul.mubr.bf16.gmra.mrb[0].mxu0 %v542
        %v691 = vpop.f32.mrb[0].mxu0
        %v692 = vadd.f32 %v354, %v691
        %v693 = vpop.f32.mrb[0].mxu0
        %v694 = vpop.f32.mrb[0].mxu0
        %v695 = vadd.f32 %v354, %v694
        %v696 = vpop.f32.mrb[0].mxu0
        %697 = vmatprep.mubr.bf16.mxu0 0
        %698 = vmatmul.mubr.bf16.gmra.mrb[0].mxu0 %v545
        %v699 = vpop.f32.mrb[0].mxu0
        %v700 = vadd.f32 %v354, %v699
        %v701 = vpop.f32.mrb[0].mxu0
        %v702 = vpop.f32.mrb[0].mxu0
        %v703 = vadd.f32 %v354, %v702
        %v704 = vpop.f32.mrb[0].mxu0
        %705 = vmatprep.mubr.bf16.mxu0 0
        %706 = vmatmul.mubr.bf16.gmra.mrb[0].mxu0 %v548
        %v707 = vpop.f32.mrb[0].mxu0
        %v708 = vadd.f32 %v354, %v707
        %v709 = vpop.f32.mrb[0].mxu0
        %v710 = vpop.f32.mrb[0].mxu0
        %v711 = vadd.f32 %v354, %v710
        %v712 = vpop.f32.mrb[0].mxu0
        %713 = vmatprep.mubr.bf16.mxu0 0
        %714 = vmatmul.mubr.bf16.gmra.mrb[0].mxu0 %v551
        %v715 = vpop.f32.mrb[0].mxu0
        %v716 = vadd.f32 %v354, %v715
        %v717 = vpop.f32.mrb[0].mxu0
        %v718 = vpop.f32.mrb[0].mxu0
        %v719 = vadd.f32 %v354, %v718
        %v720 = vpop.f32.mrb[0].mxu0
        %721 = vmatprep.mubr.bf16.mxu0 0
        %722 = vmatmul.mubr.bf16.gmra.mrb[0].mxu0 %v554
        %v723 = vpop.f32.mrb[0].mxu0
        %v724 = vadd.f32 %v354, %v723
        %v725 = vpop.f32.mrb[0].mxu0
        %v726 = vpop.f32.mrb[0].mxu0
        %v727 = vadd.f32 %v354, %v726
        %v728 = vpop.f32.mrb[0].mxu0
        %729 = vmatprep.mubr.bf16.mxu0 0
        %730 = vmatmul.mubr.bf16.gmra.mrb[0].mxu0 %v557
        %v731 = vpop.f32.mrb[0].mxu0
        %v732 = vadd.f32 %v354, %v731
        %v733 = vpop.f32.mrb[0].mxu0
        %v734 = vpop.f32.mrb[0].mxu0
        %v735 = vadd.f32 %v354, %v734
        %v736 = vpop.f32.mrb[0].mxu0
        %737 = vmatprep.mubr.bf16.mxu0 0
        %738 = vmatmul.mubr.bf16.gmra.mrb[0].mxu0 %v560
        %v739 = vpop.f32.mrb[0].mxu0
        %v740 = vadd.f32 %v354, %v739
        %v741 = vpop.f32.mrb[0].mxu0
        %v742 = vpop.f32.mrb[0].mxu0
        %v743 = vadd.f32 %v354, %v742
        %v744 = vpop.f32.mrb[0].mxu0
        %745 = vmatprep.mubr.bf16.mxu0 0
        %746 = vmatmul.mubr.bf16.gmra.mrb[0].mxu0 %v563
        %v747 = vpop.f32.mrb[0].mxu0
        %v748 = vadd.f32 %v354, %v747
        %v749 = vpop.f32.mrb[0].mxu0
        %v750 = vpop.f32.mrb[0].mxu0
        %v751 = vadd.f32 %v354, %v750
        %v752 = vpop.f32.mrb[0].mxu0
        %753 = vmatprep.mubr.bf16.mxu0 0
        %754 = vmatmul.mubr.bf16.gmra.mrb[0].mxu0 %v566
        %v755 = vpop.f32.mrb[0].mxu0
        %v756 = vadd.f32 %v354, %v755
        %v757 = vpop.f32.mrb[0].mxu0
        %v758 = vpop.f32.mrb[0].mxu0
        %v759 = vadd.f32 %v354, %v758
        %v760 = vpop.f32.mrb[0].mxu0
        %761 = vmatprep.mubr.bf16.mxu0 0
        %762 = vmatmul.mubr.bf16.gmra.mrb[0].mxu0 %v569
        %v763 = vpop.f32.mrb[0].mxu0
        %v764 = vadd.f32 %v354, %v763
        %v765 = vpop.f32.mrb[0].mxu0
        %v766 = vpop.f32.mrb[0].mxu0
        %v767 = vadd.f32 %v354, %v766
        %v768 = vpop.f32.mrb[0].mxu0
        %769 = vmatprep.mubr.bf16.mxu0 0
        %770 = vmatmul.mubr.bf16.gmra.mrb[0].mxu0 %v572
        %v771 = vpop.f32.mrb[0].mxu0
        %v772 = vadd.f32 %v354, %v771
        %v773 = vpop.f32.mrb[0].mxu0
        %v774 = vpop.f32.mrb[0].mxu0
        %v775 = vadd.f32 %v354, %v774
        %v776 = vpop.f32.mrb[0].mxu0
        %777 = vmatprep.mubr.bf16.mxu0 0
        %778 = vmatmul.mubr.bf16.gmra.mrb[0].mxu0 %v575
        %v779 = vpop.f32.mrb[0].mxu0
        %v780 = vadd.f32 %v354, %v779
        %v781 = vpop.f32.mrb[0].mxu0
        %v782 = vpop.f32.mrb[0].mxu0
        %v783 = vadd.f32 %v354, %v782
        %v784 = vpop.f32.mrb[0].mxu0
        %785 = vmatprep.mubr.bf16.mxu0 0
        %786 = vmatmul.mubr.bf16.gmra.mrb[0].mxu0 %v578
        %v787 = vpop.f32.mrb[0].mxu0
        %v788 = vadd.f32 %v354, %v787
        %v789 = vpop.f32.mrb[0].mxu0
        %v790 = vpop.f32.mrb[0].mxu0
        %v791 = vadd.f32 %v354, %v790
        %v792 = vpop.f32.mrb[0].mxu0
        %793 = vmatprep.mubr.bf16.mxu0 0
        %794 = vmatmul.mubr.bf16.gmra.mrb[0].mxu0 %v581
        %v795 = vpop.f32.mrb[0].mxu0
        %v796 = vadd.f32 %v354, %v795
        %v797 = vpop.f32.mrb[0].mxu0
        %v798 = vpop.f32.mrb[0].mxu0
        %v799 = vadd.f32 %v354, %v798
        %v800 = vpop.f32.mrb[0].mxu0
        %801 = vmatprep.mubr.bf16.mxu0 0
        %802 = vmatmul.mubr.bf16.gmra.mrb[0].mxu0 %v584
        %v803 = vpop.f32.mrb[0].mxu0
        %v804 = vadd.f32 %v354, %v803
        %v805 = vpop.f32.mrb[0].mxu0
        %v806 = vpop.f32.mrb[0].mxu0
        %v807 = vadd.f32 %v354, %v806
        %v808 = vpop.f32.mrb[0].mxu0
        %809 = vmatprep.mubr.bf16.mxu0 0
        %810 = vmatmul.mubr.bf16.gmra.mrb[0].mxu0 %v587
        %v811 = vpop.f32.mrb[0].mxu0
        %v812 = vadd.f32 %v354, %v811
        %v813 = vpop.f32.mrb[0].mxu0
        %v814 = vpop.f32.mrb[0].mxu0
        %v815 = vadd.f32 %v354, %v814
        %v816 = vpop.f32.mrb[0].mxu0
        %817 = vmatprep.mubr.bf16.mxu0 0
        %818 = vmatmul.mubr.bf16.gmra.mrb[0].mxu0 %v590
        %v819 = vpop.f32.mrb[0].mxu0
        %v820 = vadd.f32 %v354, %v819
        %v821 = vpop.f32.mrb[0].mxu0
        %v822 = vpop.f32.mrb[0].mxu0
        %v823 = vadd.f32 %v354, %v822
        %v824 = vpop.f32.mrb[0].mxu0
        %825 = vmatprep.mubr.bf16.mxu0 0
        %826 = vmatmul.mubr.bf16.gmra.mrb[0].mxu0 %v593
        %v827 = vpop.f32.mrb[0].mxu0
        %v828 = vadd.f32 %v354, %v827
        %v829 = vpop.f32.mrb[0].mxu0
        %v830 = vpop.f32.mrb[0].mxu0
        %v831 = vadd.f32 %v354, %v830
        %v832 = vpop.f32.mrb[0].mxu0
        %833 = vmatprep.mubr.bf16.mxu0 0
        %834 = vmatmul.mubr.bf16.gmra.mrb[0].mxu0 %v596
        %v835 = vpop.f32.mrb[0].mxu0
        %v836 = vadd.f32 %v354, %v835
        %v837 = vpop.f32.mrb[0].mxu0
        %v838 = vpop.f32.mrb[0].mxu0
        %v839 = vadd.f32 %v354, %v838
        %v840 = vpop.f32.mrb[0].mxu0
        %841 = vmatprep.mubr.bf16.mxu0 0
        %842 = vmatmul.mubr.bf16.gmra.mrb[0].mxu0 %v599
        %v843 = vpop.f32.mrb[0].mxu0
        %v844 = vadd.f32 %v354, %v843
        %v845 = vpop.f32.mrb[0].mxu0
        %v846 = vpop.f32.mrb[0].mxu0
        %v847 = vadd.f32 %v354, %v846
        %v848 = vpop.f32.mrb[0].mxu0
        %849 = vmatprep.mubr.bf16.mxu0 0
        %850 = vmatmul.mubr.bf16.gmra.mrb[0].mxu0 %v602
        %v851 = vpop.f32.mrb[0].mxu0
        %v852 = vadd.f32 %v354, %v851
        %v853 = vpop.f32.mrb[0].mxu0
        %v854 = vpop.f32.mrb[0].mxu0
        %v855 = vadd.f32 %v354, %v854
        %v856 = vpop.f32.mrb[0].mxu0
        %857 = vmatprep.mubr.bf16.mxu0 0
        %858 = vmatmul.mubr.bf16.gmra.mrb[0].mxu0 %v605
        %v859 = vpop.f32.mrb[0].mxu0
        %v860 = vadd.f32 %v354, %v859
        %v861 = vpop.f32.mrb[0].mxu0
        %v862 = vpop.f32.mrb[0].mxu0
        %v863 = vadd.f32 %v354, %v862
        %v864 = vpop.f32.mrb[0].mxu0
        %865 = vmatprep.mubr.bf16.mxu0 0
        %866 = vmatmul.mubr.bf16.gmra.mrb[0].mxu0 %v608
        %v867 = vpop.f32.mrb[0].mxu0
        %v868 = vadd.f32 %v354, %v867
        %v869 = vpop.f32.mrb[0].mxu0
        %v870 = vpop.f32.mrb[0].mxu0
        %v871 = vadd.f32 %v354, %v870
        %v872 = vpop.f32.mrb[0].mxu0
        %873 = vmatprep.mubr.bf16.mxu0 0
        %874 = vmatmul.mubr.bf16.gmra.mrb[0].mxu0 %v611
        %v875 = vpop.f32.mrb[0].mxu0
        %v876 = vadd.f32 %v354, %v875
        %v877 = vpop.f32.mrb[0].mxu0
        %v878 = vpop.f32.mrb[0].mxu0
        %v879 = vadd.f32 %v354, %v878
        %v880 = vpop.f32.mrb[0].mxu0
        %881 = vmatprep.mubr.bf16.mxu0 0
        %882 = vmatmul.mubr.bf16.gmra.mrb[0].mxu0 %v614
        %v883 = vpop.f32.mrb[0].mxu0
        %v884 = vadd.f32 %v354, %v883
        %v885 = vpop.f32.mrb[0].mxu0
        %v886 = vpop.f32.mrb[0].mxu0
        %v887 = vadd.f32 %v354, %v886
        %v888 = vpop.f32.mrb[0].mxu0
        %889 = vmatprep.mubr.bf16.mxu0 0
        %890 = vmatmul.mubr.bf16.gmra.mrb[0].mxu0 %v617
        %v891 = vpop.f32.mrb[0].mxu0
        %v892 = vadd.f32 %v354, %v891
        %v893 = vpop.f32.mrb[0].mxu0
        %v894 = vpop.f32.mrb[0].mxu0
        %v895 = vadd.f32 %v354, %v894
        %v896 = vpop.f32.mrb[0].mxu0
        %897 = vmatprep.mubr.bf16.mxu0 0
        %898 = vmatmul.mubr.bf16.gmra.mrb[0].mxu0 %v620
        %v899 = vpop.f32.mrb[0].mxu0
        %v900 = vadd.f32 %v354, %v899
        %v901 = vpop.f32.mrb[0].mxu0
        %v902 = vpop.f32.mrb[0].mxu0
        %v903 = vadd.f32 %v354, %v902
        %v904 = vpop.f32.mrb[0].mxu0
        %905 = vmatprep.mubr.bf16.mxu0 0
        %906 = vmatmul.mubr.bf16.gmra.mrb[0].mxu0 %v623
        %v907 = vpop.f32.mrb[0].mxu0
        %v908 = vadd.f32 %v354, %v907
        %v909 = vpop.f32.mrb[0].mxu0
        %v910 = vpop.f32.mrb[0].mxu0
        %v911 = vadd.f32 %v354, %v910
        %v912 = vpop.f32.mrb[0].mxu0
        %913 = vdwg.mxu0
        %v914 = vmax.f32 %v660, 0.0
        %v915 = vmax.f32 %v663, 0.0
        %v916 = vmax.f32 %v668, 0.0
        %v917 = vmax.f32 %v671, 0.0
        %v918 = vmax.f32 %v676, 0.0
        %v919 = vmax.f32 %v679, 0.0
        %v920 = vmax.f32 %v684, 0.0
        %v921 = vmax.f32 %v687, 0.0
        %v922 = vmax.f32 %v692, 0.0
        %v923 = vmax.f32 %v695, 0.0
        %v924 = vmax.f32 %v700, 0.0
        %v925 = vmax.f32 %v703, 0.0
        %v926 = vmax.f32 %v708, 0.0
        %v927 = vmax.f32 %v711, 0.0
        %v928 = vmax.f32 %v716, 0.0
        %v929 = vmax.f32 %v719, 0.0
        %v930 = vmax.f32 %v724, 0.0
        %v931 = vmax.f32 %v727, 0.0
        %v932 = vmax.f32 %v732, 0.0
        %v933 = vmax.f32 %v735, 0.0
        %v934 = vmax.f32 %v740, 0.0
        %v935 = vmax.f32 %v743, 0.0
        %v936 = vmax.f32 %v748, 0.0
        %v937 = vmax.f32 %v751, 0.0
        %v938 = vmax.f32 %v756, 0.0
        %v939 = vmax.f32 %v759, 0.0
        %v940 = vmax.f32 %v764, 0.0
        %v941 = vmax.f32 %v767, 0.0
        %v942 = vmax.f32 %v772, 0.0
        %v943 = vmax.f32 %v775, 0.0
        %v944 = vmax.f32 %v780, 0.0
        %v945 = vmax.f32 %v783, 0.0
        %v946 = vmax.f32 %v788, 0.0
        %v947 = vmax.f32 %v791, 0.0
        %v948 = vmax.f32 %v796, 0.0
        %v949 = vmax.f32 %v799, 0.0
        %v950 = vmax.f32 %v804, 0.0
        %v951 = vmax.f32 %v807, 0.0
        %v952 = vmax.f32 %v812, 0.0
        %v953 = vmax.f32 %v815, 0.0
        %v954 = vmax.f32 %v820, 0.0
        %v955 = vmax.f32 %v823, 0.0
        %v956 = vmax.f32 %v828, 0.0
        %v957 = vmax.f32 %v831, 0.0
        %v958 = vmax.f32 %v836, 0.0
        %v959 = vmax.f32 %v839, 0.0
        %v960 = vmax.f32 %v844, 0.0
        %v961 = vmax.f32 %v847, 0.0
        %v962 = vmax.f32 %v852, 0.0
        %v963 = vmax.f32 %v855, 0.0
        %v964 = vmax.f32 %v860, 0.0
        %v965 = vmax.f32 %v863, 0.0
        %v966 = vmax.f32 %v868, 0.0
        %v967 = vmax.f32 %v871, 0.0
        %v968 = vmax.f32 %v876, 0.0
        %v969 = vmax.f32 %v879, 0.0
        %v970 = vmax.f32 %v884, 0.0
        %v971 = vmax.f32 %v887, 0.0
        %v972 = vmax.f32 %v892, 0.0
        %v973 = vmax.f32 %v895, 0.0
        %v974 = vmax.f32 %v900, 0.0
        %v975 = vmax.f32 %v903, 0.0
        %v976 = vmax.f32 %v908, 0.0
        %v977 = vmax.f32 %v911, 0.0
        %v978 = vpack.c.bf16 %v915, %v914
        %v979 = vpack.c.bf16 %v917, %v916
        %v980 = vpack.c.bf16 %v919, %v918
        %v981 = vpack.c.bf16 %v921, %v920
        %v982 = vpack.c.bf16 %v923, %v922
        %v983 = vpack.c.bf16 %v925, %v924
        %v984 = vpack.c.bf16 %v927, %v926
        %v985 = vpack.c.bf16 %v929, %v928
        %v986 = vpack.c.bf16 %v931, %v930
        %v987 = vpack.c.bf16 %v933, %v932
        %v988 = vpack.c.bf16 %v935, %v934
        %v989 = vpack.c.bf16 %v937, %v936
        %v990 = vpack.c.bf16 %v939, %v938
        %v991 = vpack.c.bf16 %v941, %v940
        %v992 = vpack.c.bf16 %v943, %v942
        %v993 = vpack.c.bf16 %v945, %v944
        %v994 = vpack.c.bf16 %v947, %v946
        %v995 = vpack.c.bf16 %v949, %v948
        %v996 = vpack.c.bf16 %v951, %v950
        %v997 = vpack.c.bf16 %v953, %v952
        %v998 = vpack.c.bf16 %v955, %v954
        %v999 = vpack.c.bf16 %v957, %v956
        %v1000 = vpack.c.bf16 %v959, %v958
        %v1001 = vpack.c.bf16 %v961, %v960
        %v1002 = vpack.c.bf16 %v963, %v962
        %v1003 = vpack.c.bf16 %v965, %v964
        %v1004 = vpack.c.bf16 %v967, %v966
        %v1005 = vpack.c.bf16 %v969, %v968
        %v1006 = vpack.c.bf16 %v971, %v970
        %v1007 = vpack.c.bf16 %v973, %v972
        %v1008 = vpack.c.bf16 %v975, %v974
        %v1009 = vpack.c.bf16 %v977, %v976
        %v1010 = vld [vmem:[%s3] sm:$0xf]
        %v1011 = vld [vmem:[%s3 + $0x4] sm:$0xf]
        %v1012 = vld [vmem:[%s3 + $0x8] sm:$0xf]
        %v1013 = vld [vmem:[%s3 + $0xc] sm:$0xf]
        %v1014 = vld [vmem:[%s3 + $0x10] sm:$0xf]
        %v1015 = vld [vmem:[%s3 + $0x14] sm:$0xf]
        %v1016 = vld [vmem:[%s3 + $0x18] sm:$0xf]
        %v1017 = vld [vmem:[%s3 + $0x1c] sm:$0xf]
        %v1018 = vld [vmem:[%s4] sm:$0x1]
        %v1020 = vlaneseq
        %v1021 = vshrl.u32 %v1020, 7
        %v1022 = vsub.s32 0, %v1021
        %v1023 = vrot.slane %v1018, %v1022
        %v1033 = vunpack.c.l.b16 %v1010
        %v1034 = vunpack.c.l.b16 %v1011
        %v1035 = vunpack.c.l.b16 %v1012
        %v1036 = vunpack.c.l.b16 %v1013
        %v1037 = vunpack.c.l.b16 %v1014
        %v1038 = vunpack.c.l.b16 %v1015
        %v1039 = vunpack.c.l.b16 %v1016
        %v1040 = vunpack.c.l.b16 %v1017
        %v1041 = vpack.c.b16 %v1034, %v1033
        %v1042 = vpack.c.b16 %v1036, %v1035
        %v1043 = vpack.c.b16 %v1038, %v1037
        %v1044 = vpack.c.b16 %v1040, %v1039
        %vm1049 = vcmask 523264
        %v1051 = vsel %vm1049, %v978, 0
        %v1054 = vsel %vm1049, %v979, 0
        %v1057 = vsel %vm1049, %v980, 0
        %v1060 = vsel %vm1049, %v981, 0
        %v1063 = vsel %vm1049, %v982, 0
        %v1066 = vsel %vm1049, %v983, 0
        %v1069 = vsel %vm1049, %v984, 0
        %v1072 = vsel %vm1049, %v985, 0
        %v1075 = vsel %vm1049, %v986, 0
        %v1078 = vsel %vm1049, %v987, 0
        %v1081 = vsel %vm1049, %v988, 0
        %v1084 = vsel %vm1049, %v989, 0
        %v1087 = vsel %vm1049, %v990, 0
        %v1090 = vsel %vm1049, %v991, 0
        %v1093 = vsel %vm1049, %v992, 0
        %v1096 = vsel %vm1049, %v993, 0
        %v1099 = vsel %vm1049, %v994, 0
        %v1102 = vsel %vm1049, %v995, 0
        %v1105 = vsel %vm1049, %v996, 0
        %v1108 = vsel %vm1049, %v997, 0
        %v1111 = vsel %vm1049, %v998, 0
        %v1114 = vsel %vm1049, %v999, 0
        %v1117 = vsel %vm1049, %v1000, 0
        %v1120 = vsel %vm1049, %v1001, 0
        %v1123 = vsel %vm1049, %v1002, 0
        %v1126 = vsel %vm1049, %v1003, 0
        %v1129 = vsel %vm1049, %v1004, 0
        %v1132 = vsel %vm1049, %v1005, 0
        %v1135 = vsel %vm1049, %v1006, 0
        %v1138 = vsel %vm1049, %v1007, 0
        %v1141 = vsel %vm1049, %v1008, 0
        %v1144 = vsel %vm1049, %v1009, 0
        %1146 = vmatprep.subr.bf16.mxu0 0
        %1147 = vmatpush1.bf16.msra.mxu0 %v1041
        %1148 = vmatprep.subr.bf16.mxu0 0
        %1149 = vmatpush1.bf16.msra.mxu0 %v1042
        %1150 = vmatprep.subr.bf16.mxu0 0
        %1151 = vmatpush1.bf16.msra.mxu0 %v1043
        %1152 = vmatprep.subr.bf16.mxu0 0
        %1153 = vmatpush1.bf16.msra.mxu0 %v1044
        %1154 = vmatprep.subr.bf16.mxu0 0
        %1155 = vmatpush1.bf16.msra.mxu0 0
        %1156 = vmatprep.subr.bf16.mxu0 0
        %1157 = vmatpush1.bf16.msra.mxu0 0
        %1158 = vmatprep.subr.bf16.mxu0 0
        %1159 = vmatpush1.bf16.msra.mxu0 0
        %1160 = vmatprep.subr.bf16.mxu0 0
        %1161 = vmatpush1.bf16.msra.mxu0 0
        %1162 = vmatprep.subr.bf16.mxu0 0
        %1163 = vmatpush1.bf16.msra.mxu0 0
        %1164 = vmatprep.subr.bf16.mxu0 0
        %1165 = vmatpush1.bf16.msra.mxu0 0
        %1166 = vmatprep.subr.bf16.mxu0 0
        %1167 = vmatpush1.bf16.msra.mxu0 0
        %1168 = vmatprep.subr.bf16.mxu0 0
        %1169 = vmatpush1.bf16.msra.mxu0 0
        %1170 = vmatprep.subr.bf16.mxu0 0
        %1171 = vmatpush1.bf16.msra.mxu0 0
        %1172 = vmatprep.subr.bf16.mxu0 0
        %1173 = vmatpush1.bf16.msra.mxu0 0
        %1174 = vmatprep.subr.bf16.mxu0 0
        %1175 = vmatpush1.bf16.msra.mxu0 0
        %1176 = vmatprep.subr.bf16.mxu0 0
        %1177 = vmatpush1.bf16.msra.mxu0 0
        %1178 = vmatprep.mubr.bf16.mxu0 0
        %1179 = vmatmul.mubr.bf16.gmra.mrb[0].mxu0 %v1051
        %v1180 = vpop.f32.mrb[0].mxu0
        %v1181 = vadd.f32 %v1023, %v1180
        %v1182 = vpop.f32.mrb[0].mxu0
        %v1183 = vpop.f32.mrb[0].mxu0
        %v1184 = vadd.f32 %v1023, %v1183
        %v1185 = vpop.f32.mrb[0].mxu0
        %1186 = vmatprep.mubr.bf16.mxu0 0
        %1187 = vmatmul.mubr.bf16.gmra.mrb[0].mxu0 %v1054
        %v1188 = vpop.f32.mrb[0].mxu0
        %v1189 = vadd.f32 %v1023, %v1188
        %v1190 = vpop.f32.mrb[0].mxu0
        %v1191 = vpop.f32.mrb[0].mxu0
        %v1192 = vadd.f32 %v1023, %v1191
        %v1193 = vpop.f32.mrb[0].mxu0
        %1194 = vmatprep.mubr.bf16.mxu0 0
        %1195 = vmatmul.mubr.bf16.gmra.mrb[0].mxu0 %v1057
        %v1196 = vpop.f32.mrb[0].mxu0
        %v1197 = vadd.f32 %v1023, %v1196
        %v1198 = vpop.f32.mrb[0].mxu0
        %v1199 = vpop.f32.mrb[0].mxu0
        %v1200 = vadd.f32 %v1023, %v1199
        %v1201 = vpop.f32.mrb[0].mxu0
        %1202 = vmatprep.mubr.bf16.mxu0 0
        %1203 = vmatmul.mubr.bf16.gmra.mrb[0].mxu0 %v1060
        %v1204 = vpop.f32.mrb[0].mxu0
        %v1205 = vadd.f32 %v1023, %v1204
        %v1206 = vpop.f32.mrb[0].mxu0
        %v1207 = vpop.f32.mrb[0].mxu0
        %v1208 = vadd.f32 %v1023, %v1207
        %v1209 = vpop.f32.mrb[0].mxu0
        %1210 = vmatprep.mubr.bf16.mxu0 0
        %1211 = vmatmul.mubr.bf16.gmra.mrb[0].mxu0 %v1063
        %v1212 = vpop.f32.mrb[0].mxu0
        %v1213 = vadd.f32 %v1023, %v1212
        %v1214 = vpop.f32.mrb[0].mxu0
        %v1215 = vpop.f32.mrb[0].mxu0
        %v1216 = vadd.f32 %v1023, %v1215
        %v1217 = vpop.f32.mrb[0].mxu0
        %1218 = vmatprep.mubr.bf16.mxu0 0
        %1219 = vmatmul.mubr.bf16.gmra.mrb[0].mxu0 %v1066
        %v1220 = vpop.f32.mrb[0].mxu0
        %v1221 = vadd.f32 %v1023, %v1220
        %v1222 = vpop.f32.mrb[0].mxu0
        %v1223 = vpop.f32.mrb[0].mxu0
        %v1224 = vadd.f32 %v1023, %v1223
        %v1225 = vpop.f32.mrb[0].mxu0
        %1226 = vmatprep.mubr.bf16.mxu0 0
        %1227 = vmatmul.mubr.bf16.gmra.mrb[0].mxu0 %v1069
        %v1228 = vpop.f32.mrb[0].mxu0
        %v1229 = vadd.f32 %v1023, %v1228
        %v1230 = vpop.f32.mrb[0].mxu0
        %v1231 = vpop.f32.mrb[0].mxu0
        %v1232 = vadd.f32 %v1023, %v1231
        %v1233 = vpop.f32.mrb[0].mxu0
        %1234 = vmatprep.mubr.bf16.mxu0 0
        %1235 = vmatmul.mubr.bf16.gmra.mrb[0].mxu0 %v1072
        %v1236 = vpop.f32.mrb[0].mxu0
        %v1237 = vadd.f32 %v1023, %v1236
        %v1238 = vpop.f32.mrb[0].mxu0
        %v1239 = vpop.f32.mrb[0].mxu0
        %v1240 = vadd.f32 %v1023, %v1239
        %v1241 = vpop.f32.mrb[0].mxu0
        %1242 = vmatprep.mubr.bf16.mxu0 0
        %1243 = vmatmul.mubr.bf16.gmra.mrb[0].mxu0 %v1075
        %v1244 = vpop.f32.mrb[0].mxu0
        %v1245 = vadd.f32 %v1023, %v1244
        %v1246 = vpop.f32.mrb[0].mxu0
        %v1247 = vpop.f32.mrb[0].mxu0
        %v1248 = vadd.f32 %v1023, %v1247
        %v1249 = vpop.f32.mrb[0].mxu0
        %1250 = vmatprep.mubr.bf16.mxu0 0
        %1251 = vmatmul.mubr.bf16.gmra.mrb[0].mxu0 %v1078
        %v1252 = vpop.f32.mrb[0].mxu0
        %v1253 = vadd.f32 %v1023, %v1252
        %v1254 = vpop.f32.mrb[0].mxu0
        %v1255 = vpop.f32.mrb[0].mxu0
        %v1256 = vadd.f32 %v1023, %v1255
        %v1257 = vpop.f32.mrb[0].mxu0
        %1258 = vmatprep.mubr.bf16.mxu0 0
        %1259 = vmatmul.mubr.bf16.gmra.mrb[0].mxu0 %v1081
        %v1260 = vpop.f32.mrb[0].mxu0
        %v1261 = vadd.f32 %v1023, %v1260
        %v1262 = vpop.f32.mrb[0].mxu0
        %v1263 = vpop.f32.mrb[0].mxu0
        %v1264 = vadd.f32 %v1023, %v1263
        %v1265 = vpop.f32.mrb[0].mxu0
        %1266 = vmatprep.mubr.bf16.mxu0 0
        %1267 = vmatmul.mubr.bf16.gmra.mrb[0].mxu0 %v1084
        %v1268 = vpop.f32.mrb[0].mxu0
        %v1269 = vadd.f32 %v1023, %v1268
        %v1270 = vpop.f32.mrb[0].mxu0
        %v1271 = vpop.f32.mrb[0].mxu0
        %v1272 = vadd.f32 %v1023, %v1271
        %v1273 = vpop.f32.mrb[0].mxu0
        %1274 = vmatprep.mubr.bf16.mxu0 0
        %1275 = vmatmul.mubr.bf16.gmra.mrb[0].mxu0 %v1087
        %v1276 = vpop.f32.mrb[0].mxu0
        %v1277 = vadd.f32 %v1023, %v1276
        %v1278 = vpop.f32.mrb[0].mxu0
        %v1279 = vpop.f32.mrb[0].mxu0
        %v1280 = vadd.f32 %v1023, %v1279
        %v1281 = vpop.f32.mrb[0].mxu0
        %1282 = vmatprep.mubr.bf16.mxu0 0
        %1283 = vmatmul.mubr.bf16.gmra.mrb[0].mxu0 %v1090
        %v1284 = vpop.f32.mrb[0].mxu0
        %v1285 = vadd.f32 %v1023, %v1284
        %v1286 = vpop.f32.mrb[0].mxu0
        %v1287 = vpop.f32.mrb[0].mxu0
        %v1288 = vadd.f32 %v1023, %v1287
        %v1289 = vpop.f32.mrb[0].mxu0
        %1290 = vmatprep.mubr.bf16.mxu0 0
        %1291 = vmatmul.mubr.bf16.gmra.mrb[0].mxu0 %v1093
        %v1292 = vpop.f32.mrb[0].mxu0
        %v1293 = vadd.f32 %v1023, %v1292
        %v1294 = vpop.f32.mrb[0].mxu0
        %v1295 = vpop.f32.mrb[0].mxu0
        %v1296 = vadd.f32 %v1023, %v1295
        %v1297 = vpop.f32.mrb[0].mxu0
        %1298 = vmatprep.mubr.bf16.mxu0 0
        %1299 = vmatmul.mubr.bf16.gmra.mrb[0].mxu0 %v1096
        %v1300 = vpop.f32.mrb[0].mxu0
        %v1301 = vadd.f32 %v1023, %v1300
        %v1302 = vpop.f32.mrb[0].mxu0
        %v1303 = vpop.f32.mrb[0].mxu0
        %v1304 = vadd.f32 %v1023, %v1303
        %v1305 = vpop.f32.mrb[0].mxu0
        %1306 = vmatprep.mubr.bf16.mxu0 0
        %1307 = vmatmul.mubr.bf16.gmra.mrb[0].mxu0 %v1099
        %v1308 = vpop.f32.mrb[0].mxu0
        %v1309 = vadd.f32 %v1023, %v1308
        %v1310 = vpop.f32.mrb[0].mxu0
        %v1311 = vpop.f32.mrb[0].mxu0
        %v1312 = vadd.f32 %v1023, %v1311
        %v1313 = vpop.f32.mrb[0].mxu0
        %1314 = vmatprep.mubr.bf16.mxu0 0
        %1315 = vmatmul.mubr.bf16.gmra.mrb[0].mxu0 %v1102
        %v1316 = vpop.f32.mrb[0].mxu0
        %v1317 = vadd.f32 %v1023, %v1316
        %v1318 = vpop.f32.mrb[0].mxu0
        %v1319 = vpop.f32.mrb[0].mxu0
        %v1320 = vadd.f32 %v1023, %v1319
        %v1321 = vpop.f32.mrb[0].mxu0
        %1322 = vmatprep.mubr.bf16.mxu0 0
        %1323 = vmatmul.mubr.bf16.gmra.mrb[0].mxu0 %v1105
        %v1324 = vpop.f32.mrb[0].mxu0
        %v1325 = vadd.f32 %v1023, %v1324
        %v1326 = vpop.f32.mrb[0].mxu0
        %v1327 = vpop.f32.mrb[0].mxu0
        %v1328 = vadd.f32 %v1023, %v1327
        %v1329 = vpop.f32.mrb[0].mxu0
        %1330 = vmatprep.mubr.bf16.mxu0 0
        %1331 = vmatmul.mubr.bf16.gmra.mrb[0].mxu0 %v1108
        %v1332 = vpop.f32.mrb[0].mxu0
        %v1333 = vadd.f32 %v1023, %v1332
        %v1334 = vpop.f32.mrb[0].mxu0
        %v1335 = vpop.f32.mrb[0].mxu0
        %v1336 = vadd.f32 %v1023, %v1335
        %v1337 = vpop.f32.mrb[0].mxu0
        %1338 = vmatprep.mubr.bf16.mxu0 0
        %1339 = vmatmul.mubr.bf16.gmra.mrb[0].mxu0 %v1111
        %v1340 = vpop.f32.mrb[0].mxu0
        %v1341 = vadd.f32 %v1023, %v1340
        %v1342 = vpop.f32.mrb[0].mxu0
        %v1343 = vpop.f32.mrb[0].mxu0
        %v1344 = vadd.f32 %v1023, %v1343
        %v1345 = vpop.f32.mrb[0].mxu0
        %1346 = vmatprep.mubr.bf16.mxu0 0
        %1347 = vmatmul.mubr.bf16.gmra.mrb[0].mxu0 %v1114
        %v1348 = vpop.f32.mrb[0].mxu0
        %v1349 = vadd.f32 %v1023, %v1348
        %v1350 = vpop.f32.mrb[0].mxu0
        %v1351 = vpop.f32.mrb[0].mxu0
        %v1352 = vadd.f32 %v1023, %v1351
        %v1353 = vpop.f32.mrb[0].mxu0
        %1354 = vmatprep.mubr.bf16.mxu0 0
        %1355 = vmatmul.mubr.bf16.gmra.mrb[0].mxu0 %v1117
        %v1356 = vpop.f32.mrb[0].mxu0
        %v1357 = vadd.f32 %v1023, %v1356
        %v1358 = vpop.f32.mrb[0].mxu0
        %v1359 = vpop.f32.mrb[0].mxu0
        %v1360 = vadd.f32 %v1023, %v1359
        %v1361 = vpop.f32.mrb[0].mxu0
        %1362 = vmatprep.mubr.bf16.mxu0 0
        %1363 = vmatmul.mubr.bf16.gmra.mrb[0].mxu0 %v1120
        %v1364 = vpop.f32.mrb[0].mxu0
        %v1365 = vadd.f32 %v1023, %v1364
        %v1366 = vpop.f32.mrb[0].mxu0
        %v1367 = vpop.f32.mrb[0].mxu0
        %v1368 = vadd.f32 %v1023, %v1367
        %v1369 = vpop.f32.mrb[0].mxu0
        %1370 = vmatprep.mubr.bf16.mxu0 0
        %1371 = vmatmul.mubr.bf16.gmra.mrb[0].mxu0 %v1123
        %v1372 = vpop.f32.mrb[0].mxu0
        %v1373 = vadd.f32 %v1023, %v1372
        %v1374 = vpop.f32.mrb[0].mxu0
        %v1375 = vpop.f32.mrb[0].mxu0
        %v1376 = vadd.f32 %v1023, %v1375
        %v1377 = vpop.f32.mrb[0].mxu0
        %1378 = vmatprep.mubr.bf16.mxu0 0
        %1379 = vmatmul.mubr.bf16.gmra.mrb[0].mxu0 %v1126
        %v1380 = vpop.f32.mrb[0].mxu0
        %v1381 = vadd.f32 %v1023, %v1380
        %v1382 = vpop.f32.mrb[0].mxu0
        %v1383 = vpop.f32.mrb[0].mxu0
        %v1384 = vadd.f32 %v1023, %v1383
        %v1385 = vpop.f32.mrb[0].mxu0
        %1386 = vmatprep.mubr.bf16.mxu0 0
        %1387 = vmatmul.mubr.bf16.gmra.mrb[0].mxu0 %v1129
        %v1388 = vpop.f32.mrb[0].mxu0
        %v1389 = vadd.f32 %v1023, %v1388
        %v1390 = vpop.f32.mrb[0].mxu0
        %v1391 = vpop.f32.mrb[0].mxu0
        %v1392 = vadd.f32 %v1023, %v1391
        %v1393 = vpop.f32.mrb[0].mxu0
        %1394 = vmatprep.mubr.bf16.mxu0 0
        %1395 = vmatmul.mubr.bf16.gmra.mrb[0].mxu0 %v1132
        %v1396 = vpop.f32.mrb[0].mxu0
        %v1397 = vadd.f32 %v1023, %v1396
        %v1398 = vpop.f32.mrb[0].mxu0
        %v1399 = vpop.f32.mrb[0].mxu0
        %v1400 = vadd.f32 %v1023, %v1399
        %v1401 = vpop.f32.mrb[0].mxu0
        %1402 = vmatprep.mubr.bf16.mxu0 0
        %1403 = vmatmul.mubr.bf16.gmra.mrb[0].mxu0 %v1135
        %v1404 = vpop.f32.mrb[0].mxu0
        %v1405 = vadd.f32 %v1023, %v1404
        %v1406 = vpop.f32.mrb[0].mxu0
        %v1407 = vpop.f32.mrb[0].mxu0
        %v1408 = vadd.f32 %v1023, %v1407
        %v1409 = vpop.f32.mrb[0].mxu0
        %1410 = vmatprep.mubr.bf16.mxu0 0
        %1411 = vmatmul.mubr.bf16.gmra.mrb[0].mxu0 %v1138
        %v1412 = vpop.f32.mrb[0].mxu0
        %v1413 = vadd.f32 %v1023, %v1412
        %v1414 = vpop.f32.mrb[0].mxu0
        %v1415 = vpop.f32.mrb[0].mxu0
        %v1416 = vadd.f32 %v1023, %v1415
        %v1417 = vpop.f32.mrb[0].mxu0
        %1418 = vmatprep.mubr.bf16.mxu0 0
        %1419 = vmatmul.mubr.bf16.gmra.mrb[0].mxu0 %v1141
        %v1420 = vpop.f32.mrb[0].mxu0
        %v1421 = vadd.f32 %v1023, %v1420
        %v1422 = vpop.f32.mrb[0].mxu0
        %v1423 = vpop.f32.mrb[0].mxu0
        %v1424 = vadd.f32 %v1023, %v1423
        %v1425 = vpop.f32.mrb[0].mxu0
        %1426 = vmatprep.mubr.bf16.mxu0 0
        %1427 = vmatmul.mubr.bf16.gmra.mrb[0].mxu0 %v1144
        %v1428 = vpop.f32.mrb[0].mxu0
        %v1429 = vadd.f32 %v1023, %v1428
        %v1430 = vpop.f32.mrb[0].mxu0
        %v1431 = vpop.f32.mrb[0].mxu0
        %v1432 = vadd.f32 %v1023, %v1431
        %v1433 = vpop.f32.mrb[0].mxu0
        %1434 = vdwg.mxu0
        %v1435 = vmax.f32 %v1181, 0.0
        %v1436 = vmax.f32 %v1184, 0.0
        %v1437 = vmax.f32 %v1189, 0.0
        %v1438 = vmax.f32 %v1192, 0.0
        %v1439 = vmax.f32 %v1197, 0.0
        %v1440 = vmax.f32 %v1200, 0.0
        %v1441 = vmax.f32 %v1205, 0.0
        %v1442 = vmax.f32 %v1208, 0.0
        %v1443 = vmax.f32 %v1213, 0.0
        %v1444 = vmax.f32 %v1216, 0.0
        %v1445 = vmax.f32 %v1221, 0.0
        %v1446 = vmax.f32 %v1224, 0.0
        %v1447 = vmax.f32 %v1229, 0.0
        %v1448 = vmax.f32 %v1232, 0.0
        %v1449 = vmax.f32 %v1237, 0.0
        %v1450 = vmax.f32 %v1240, 0.0
        %v1451 = vmax.f32 %v1245, 0.0
        %v1452 = vmax.f32 %v1248, 0.0
        %v1453 = vmax.f32 %v1253, 0.0
        %v1454 = vmax.f32 %v1256, 0.0
        %v1455 = vmax.f32 %v1261, 0.0
        %v1456 = vmax.f32 %v1264, 0.0
        %v1457 = vmax.f32 %v1269, 0.0
        %v1458 = vmax.f32 %v1272, 0.0
        %v1459 = vmax.f32 %v1277, 0.0
        %v1460 = vmax.f32 %v1280, 0.0
        %v1461 = vmax.f32 %v1285, 0.0
        %v1462 = vmax.f32 %v1288, 0.0
        %v1463 = vmax.f32 %v1293, 0.0
        %v1464 = vmax.f32 %v1296, 0.0
        %v1465 = vmax.f32 %v1301, 0.0
        %v1466 = vmax.f32 %v1304, 0.0
        %v1467 = vmax.f32 %v1309, 0.0
        %v1468 = vmax.f32 %v1312, 0.0
        %v1469 = vmax.f32 %v1317, 0.0
        %v1470 = vmax.f32 %v1320, 0.0
        %v1471 = vmax.f32 %v1325, 0.0
        %v1472 = vmax.f32 %v1328, 0.0
        %v1473 = vmax.f32 %v1333, 0.0
        %v1474 = vmax.f32 %v1336, 0.0
        %v1475 = vmax.f32 %v1341, 0.0
        %v1476 = vmax.f32 %v1344, 0.0
        %v1477 = vmax.f32 %v1349, 0.0
        %v1478 = vmax.f32 %v1352, 0.0
        %v1479 = vmax.f32 %v1357, 0.0
        %v1480 = vmax.f32 %v1360, 0.0
        %v1481 = vmax.f32 %v1365, 0.0
        %v1482 = vmax.f32 %v1368, 0.0
        %v1483 = vmax.f32 %v1373, 0.0
        %v1484 = vmax.f32 %v1376, 0.0
        %v1485 = vmax.f32 %v1381, 0.0
        %v1486 = vmax.f32 %v1384, 0.0
        %v1487 = vmax.f32 %v1389, 0.0
        %v1488 = vmax.f32 %v1392, 0.0
        %v1489 = vmax.f32 %v1397, 0.0
        %v1490 = vmax.f32 %v1400, 0.0
        %v1491 = vmax.f32 %v1405, 0.0
        %v1492 = vmax.f32 %v1408, 0.0
        %v1493 = vmax.f32 %v1413, 0.0
        %v1494 = vmax.f32 %v1416, 0.0
        %v1495 = vmax.f32 %v1421, 0.0
        %v1496 = vmax.f32 %v1424, 0.0
        %v1497 = vmax.f32 %v1429, 0.0
        %v1498 = vmax.f32 %v1432, 0.0
        %v1499 = vpack.c.bf16 %v1436, %v1435
        %v1500 = vpack.c.bf16 %v1438, %v1437
        %v1501 = vpack.c.bf16 %v1440, %v1439
        %v1502 = vpack.c.bf16 %v1442, %v1441
        %v1503 = vpack.c.bf16 %v1444, %v1443
        %v1504 = vpack.c.bf16 %v1446, %v1445
        %v1505 = vpack.c.bf16 %v1448, %v1447
        %v1506 = vpack.c.bf16 %v1450, %v1449
        %v1507 = vpack.c.bf16 %v1452, %v1451
        %v1508 = vpack.c.bf16 %v1454, %v1453
        %v1509 = vpack.c.bf16 %v1456, %v1455
        %v1510 = vpack.c.bf16 %v1458, %v1457
        %v1511 = vpack.c.bf16 %v1460, %v1459
        %v1512 = vpack.c.bf16 %v1462, %v1461
        %v1513 = vpack.c.bf16 %v1464, %v1463
        %v1514 = vpack.c.bf16 %v1466, %v1465
        %v1515 = vpack.c.bf16 %v1468, %v1467
        %v1516 = vpack.c.bf16 %v1470, %v1469
        %v1517 = vpack.c.bf16 %v1472, %v1471
        %v1518 = vpack.c.bf16 %v1474, %v1473
        %v1519 = vpack.c.bf16 %v1476, %v1475
        %v1520 = vpack.c.bf16 %v1478, %v1477
        %v1521 = vpack.c.bf16 %v1480, %v1479
        %v1522 = vpack.c.bf16 %v1482, %v1481
        %v1523 = vpack.c.bf16 %v1484, %v1483
        %v1524 = vpack.c.bf16 %v1486, %v1485
        %v1525 = vpack.c.bf16 %v1488, %v1487
        %v1526 = vpack.c.bf16 %v1490, %v1489
        %v1527 = vpack.c.bf16 %v1492, %v1491
        %v1528 = vpack.c.bf16 %v1494, %v1493
        %v1529 = vpack.c.bf16 %v1496, %v1495
        %v1530 = vpack.c.bf16 %v1498, %v1497
        %v1531 = vld [vmem:[%s5] sm:$0xf]
        %v1532 = vld [vmem:[%s5 + $0x4] sm:$0xf]
        %v1533 = vld [vmem:[%s5 + $0x8] sm:$0xf]
        %v1534 = vld [vmem:[%s5 + $0xc] sm:$0xf]
        %v1535 = vld [vmem:[%s5 + $0x10] sm:$0xf]
        %v1536 = vld [vmem:[%s5 + $0x14] sm:$0xf]
        %v1537 = vld [vmem:[%s5 + $0x18] sm:$0xf]
        %v1538 = vld [vmem:[%s5 + $0x1c] sm:$0xf]
        %v1539 = vld [vmem:[%s6] sm:$0x1]
        %v1541 = vlaneseq
        %v1542 = vshrl.u32 %v1541, 7
        %v1543 = vsub.s32 0, %v1542
        %v1544 = vrot.slane %v1539, %v1543
        %v1554 = vunpack.c.l.b16 %v1531
        %v1555 = vunpack.c.l.b16 %v1532
        %v1556 = vunpack.c.l.b16 %v1533
        %v1557 = vunpack.c.l.b16 %v1534
        %v1558 = vunpack.c.l.b16 %v1535
        %v1559 = vunpack.c.l.b16 %v1536
        %v1560 = vunpack.c.l.b16 %v1537
        %v1561 = vunpack.c.l.b16 %v1538
        %v1562 = vpack.c.b16 %v1555, %v1554
        %v1563 = vpack.c.b16 %v1557, %v1556
        %v1564 = vpack.c.b16 %v1559, %v1558
        %v1565 = vpack.c.b16 %v1561, %v1560
        %v1571 = vsel %vm1049, %v1499, 0
        %v1574 = vsel %vm1049, %v1500, 0
        %v1577 = vsel %vm1049, %v1501, 0
        %v1580 = vsel %vm1049, %v1502, 0
        %v1583 = vsel %vm1049, %v1503, 0
        %v1586 = vsel %vm1049, %v1504, 0
        %v1589 = vsel %vm1049, %v1505, 0
        %v1592 = vsel %vm1049, %v1506, 0
        %v1595 = vsel %vm1049, %v1507, 0
        %v1598 = vsel %vm1049, %v1508, 0
        %v1601 = vsel %vm1049, %v1509, 0
        %v1604 = vsel %vm1049, %v1510, 0
        %v1607 = vsel %vm1049, %v1511, 0
        %v1610 = vsel %vm1049, %v1512, 0
        %v1613 = vsel %vm1049, %v1513, 0
        %v1616 = vsel %vm1049, %v1514, 0
        %v1619 = vsel %vm1049, %v1515, 0
        %v1622 = vsel %vm1049, %v1516, 0
        %v1625 = vsel %vm1049, %v1517, 0
        %v1628 = vsel %vm1049, %v1518, 0
        %v1631 = vsel %vm1049, %v1519, 0
        %v1634 = vsel %vm1049, %v1520, 0
        %v1637 = vsel %vm1049, %v1521, 0
        %v1640 = vsel %vm1049, %v1522, 0
        %v1643 = vsel %vm1049, %v1523, 0
        %v1646 = vsel %vm1049, %v1524, 0
        %v1649 = vsel %vm1049, %v1525, 0
        %v1652 = vsel %vm1049, %v1526, 0
        %v1655 = vsel %vm1049, %v1527, 0
        %v1658 = vsel %vm1049, %v1528, 0
        %v1661 = vsel %vm1049, %v1529, 0
        %v1664 = vsel %vm1049, %v1530, 0
        %1666 = vmatprep.subr.bf16.mxu0 0
        %1667 = vmatpush1.bf16.msra.mxu0 %v1562
        %1668 = vmatprep.subr.bf16.mxu0 0
        %1669 = vmatpush1.bf16.msra.mxu0 %v1563
        %1670 = vmatprep.subr.bf16.mxu0 0
        %1671 = vmatpush1.bf16.msra.mxu0 %v1564
        %1672 = vmatprep.subr.bf16.mxu0 0
        %1673 = vmatpush1.bf16.msra.mxu0 %v1565
        %1674 = vmatprep.subr.bf16.mxu0 0
        %1675 = vmatpush1.bf16.msra.mxu0 0
        %1676 = vmatprep.subr.bf16.mxu0 0
        %1677 = vmatpush1.bf16.msra.mxu0 0
        %1678 = vmatprep.subr.bf16.mxu0 0
        %1679 = vmatpush1.bf16.msra.mxu0 0
        %1680 = vmatprep.subr.bf16.mxu0 0
        %1681 = vmatpush1.bf16.msra.mxu0 0
        %1682 = vmatprep.subr.bf16.mxu0 0
        %1683 = vmatpush1.bf16.msra.mxu0 0
        %1684 = vmatprep.subr.bf16.mxu0 0
        %1685 = vmatpush1.bf16.msra.mxu0 0
        %1686 = vmatprep.subr.bf16.mxu0 0
        %1687 = vmatpush1.bf16.msra.mxu0 0
        %1688 = vmatprep.subr.bf16.mxu0 0
        %1689 = vmatpush1.bf16.msra.mxu0 0
        %1690 = vmatprep.subr.bf16.mxu0 0
        %1691 = vmatpush1.bf16.msra.mxu0 0
        %1692 = vmatprep.subr.bf16.mxu0 0
        %1693 = vmatpush1.bf16.msra.mxu0 0
        %1694 = vmatprep.subr.bf16.mxu0 0
        %1695 = vmatpush1.bf16.msra.mxu0 0
        %1696 = vmatprep.subr.bf16.mxu0 0
        %1697 = vmatpush1.bf16.msra.mxu0 0
        %1698 = vmatprep.mubr.bf16.mxu0 0
        %1699 = vmatmul.mubr.bf16.gmra.mrb[0].mxu0 %v1571
        %v1700 = vpop.f32.mrb[0].mxu0
        %v1701 = vadd.f32 %v1544, %v1700
        %v1702 = vpop.f32.mrb[0].mxu0
        %v1703 = vpop.f32.mrb[0].mxu0
        %v1704 = vadd.f32 %v1544, %v1703
        %v1705 = vpop.f32.mrb[0].mxu0
        %1706 = vmatprep.mubr.bf16.mxu0 0
        %1707 = vmatmul.mubr.bf16.gmra.mrb[0].mxu0 %v1574
        %v1708 = vpop.f32.mrb[0].mxu0
        %v1709 = vadd.f32 %v1544, %v1708
        %v1710 = vpop.f32.mrb[0].mxu0
        %v1711 = vpop.f32.mrb[0].mxu0
        %v1712 = vadd.f32 %v1544, %v1711
        %v1713 = vpop.f32.mrb[0].mxu0
        %1714 = vmatprep.mubr.bf16.mxu0 0
        %1715 = vmatmul.mubr.bf16.gmra.mrb[0].mxu0 %v1577
        %v1716 = vpop.f32.mrb[0].mxu0
        %v1717 = vadd.f32 %v1544, %v1716
        %v1718 = vpop.f32.mrb[0].mxu0
        %v1719 = vpop.f32.mrb[0].mxu0
        %v1720 = vadd.f32 %v1544, %v1719
        %v1721 = vpop.f32.mrb[0].mxu0
        %1722 = vmatprep.mubr.bf16.mxu0 0
        %1723 = vmatmul.mubr.bf16.gmra.mrb[0].mxu0 %v1580
        %v1724 = vpop.f32.mrb[0].mxu0
        %v1725 = vadd.f32 %v1544, %v1724
        %v1726 = vpop.f32.mrb[0].mxu0
        %v1727 = vpop.f32.mrb[0].mxu0
        %v1728 = vadd.f32 %v1544, %v1727
        %v1729 = vpop.f32.mrb[0].mxu0
        %1730 = vmatprep.mubr.bf16.mxu0 0
        %1731 = vmatmul.mubr.bf16.gmra.mrb[0].mxu0 %v1583
        %v1732 = vpop.f32.mrb[0].mxu0
        %v1733 = vadd.f32 %v1544, %v1732
        %v1734 = vpop.f32.mrb[0].mxu0
        %v1735 = vpop.f32.mrb[0].mxu0
        %v1736 = vadd.f32 %v1544, %v1735
        %v1737 = vpop.f32.mrb[0].mxu0
        %1738 = vmatprep.mubr.bf16.mxu0 0
        %1739 = vmatmul.mubr.bf16.gmra.mrb[0].mxu0 %v1586
        %v1740 = vpop.f32.mrb[0].mxu0
        %v1741 = vadd.f32 %v1544, %v1740
        %v1742 = vpop.f32.mrb[0].mxu0
        %v1743 = vpop.f32.mrb[0].mxu0
        %v1744 = vadd.f32 %v1544, %v1743
        %v1745 = vpop.f32.mrb[0].mxu0
        %1746 = vmatprep.mubr.bf16.mxu0 0
        %1747 = vmatmul.mubr.bf16.gmra.mrb[0].mxu0 %v1589
        %v1748 = vpop.f32.mrb[0].mxu0
        %v1749 = vadd.f32 %v1544, %v1748
        %v1750 = vpop.f32.mrb[0].mxu0
        %v1751 = vpop.f32.mrb[0].mxu0
        %v1752 = vadd.f32 %v1544, %v1751
        %v1753 = vpop.f32.mrb[0].mxu0
        %1754 = vmatprep.mubr.bf16.mxu0 0
        %1755 = vmatmul.mubr.bf16.gmra.mrb[0].mxu0 %v1592
        %v1756 = vpop.f32.mrb[0].mxu0
        %v1757 = vadd.f32 %v1544, %v1756
        %v1758 = vpop.f32.mrb[0].mxu0
        %v1759 = vpop.f32.mrb[0].mxu0
        %v1760 = vadd.f32 %v1544, %v1759
        %v1761 = vpop.f32.mrb[0].mxu0
        %1762 = vmatprep.mubr.bf16.mxu0 0
        %1763 = vmatmul.mubr.bf16.gmra.mrb[0].mxu0 %v1595
        %v1764 = vpop.f32.mrb[0].mxu0
        %v1765 = vadd.f32 %v1544, %v1764
        %v1766 = vpop.f32.mrb[0].mxu0
        %v1767 = vpop.f32.mrb[0].mxu0
        %v1768 = vadd.f32 %v1544, %v1767
        %v1769 = vpop.f32.mrb[0].mxu0
        %1770 = vmatprep.mubr.bf16.mxu0 0
        %1771 = vmatmul.mubr.bf16.gmra.mrb[0].mxu0 %v1598
        %v1772 = vpop.f32.mrb[0].mxu0
        %v1773 = vadd.f32 %v1544, %v1772
        %v1774 = vpop.f32.mrb[0].mxu0
        %v1775 = vpop.f32.mrb[0].mxu0
        %v1776 = vadd.f32 %v1544, %v1775
        %v1777 = vpop.f32.mrb[0].mxu0
        %1778 = vmatprep.mubr.bf16.mxu0 0
        %1779 = vmatmul.mubr.bf16.gmra.mrb[0].mxu0 %v1601
        %v1780 = vpop.f32.mrb[0].mxu0
        %v1781 = vadd.f32 %v1544, %v1780
        %v1782 = vpop.f32.mrb[0].mxu0
        %v1783 = vpop.f32.mrb[0].mxu0
        %v1784 = vadd.f32 %v1544, %v1783
        %v1785 = vpop.f32.mrb[0].mxu0
        %1786 = vmatprep.mubr.bf16.mxu0 0
        %1787 = vmatmul.mubr.bf16.gmra.mrb[0].mxu0 %v1604
        %v1788 = vpop.f32.mrb[0].mxu0
        %v1789 = vadd.f32 %v1544, %v1788
        %v1790 = vpop.f32.mrb[0].mxu0
        %v1791 = vpop.f32.mrb[0].mxu0
        %v1792 = vadd.f32 %v1544, %v1791
        %v1793 = vpop.f32.mrb[0].mxu0
        %1794 = vmatprep.mubr.bf16.mxu0 0
        %1795 = vmatmul.mubr.bf16.gmra.mrb[0].mxu0 %v1607
        %v1796 = vpop.f32.mrb[0].mxu0
        %v1797 = vadd.f32 %v1544, %v1796
        %v1798 = vpop.f32.mrb[0].mxu0
        %v1799 = vpop.f32.mrb[0].mxu0
        %v1800 = vadd.f32 %v1544, %v1799
        %v1801 = vpop.f32.mrb[0].mxu0
        %1802 = vmatprep.mubr.bf16.mxu0 0
        %1803 = vmatmul.mubr.bf16.gmra.mrb[0].mxu0 %v1610
        %v1804 = vpop.f32.mrb[0].mxu0
        %v1805 = vadd.f32 %v1544, %v1804
        %v1806 = vpop.f32.mrb[0].mxu0
        %v1807 = vpop.f32.mrb[0].mxu0
        %v1808 = vadd.f32 %v1544, %v1807
        %v1809 = vpop.f32.mrb[0].mxu0
        %1810 = vmatprep.mubr.bf16.mxu0 0
        %1811 = vmatmul.mubr.bf16.gmra.mrb[0].mxu0 %v1613
        %v1812 = vpop.f32.mrb[0].mxu0
        %v1813 = vadd.f32 %v1544, %v1812
        %v1814 = vpop.f32.mrb[0].mxu0
        %v1815 = vpop.f32.mrb[0].mxu0
        %v1816 = vadd.f32 %v1544, %v1815
        %v1817 = vpop.f32.mrb[0].mxu0
        %1818 = vmatprep.mubr.bf16.mxu0 0
        %1819 = vmatmul.mubr.bf16.gmra.mrb[0].mxu0 %v1616
        %v1820 = vpop.f32.mrb[0].mxu0
        %v1821 = vadd.f32 %v1544, %v1820
        %v1822 = vpop.f32.mrb[0].mxu0
        %v1823 = vpop.f32.mrb[0].mxu0
        %v1824 = vadd.f32 %v1544, %v1823
        %v1825 = vpop.f32.mrb[0].mxu0
        %1826 = vmatprep.mubr.bf16.mxu0 0
        %1827 = vmatmul.mubr.bf16.gmra.mrb[0].mxu0 %v1619
        %v1828 = vpop.f32.mrb[0].mxu0
        %v1829 = vadd.f32 %v1544, %v1828
        %v1830 = vpop.f32.mrb[0].mxu0
        %v1831 = vpop.f32.mrb[0].mxu0
        %v1832 = vadd.f32 %v1544, %v1831
        %v1833 = vpop.f32.mrb[0].mxu0
        %1834 = vmatprep.mubr.bf16.mxu0 0
        %1835 = vmatmul.mubr.bf16.gmra.mrb[0].mxu0 %v1622
        %v1836 = vpop.f32.mrb[0].mxu0
        %v1837 = vadd.f32 %v1544, %v1836
        %v1838 = vpop.f32.mrb[0].mxu0
        %v1839 = vpop.f32.mrb[0].mxu0
        %v1840 = vadd.f32 %v1544, %v1839
        %v1841 = vpop.f32.mrb[0].mxu0
        %1842 = vmatprep.mubr.bf16.mxu0 0
        %1843 = vmatmul.mubr.bf16.gmra.mrb[0].mxu0 %v1625
        %v1844 = vpop.f32.mrb[0].mxu0
        %v1845 = vadd.f32 %v1544, %v1844
        %v1846 = vpop.f32.mrb[0].mxu0
        %v1847 = vpop.f32.mrb[0].mxu0
        %v1848 = vadd.f32 %v1544, %v1847
        %v1849 = vpop.f32.mrb[0].mxu0
        %1850 = vmatprep.mubr.bf16.mxu0 0
        %1851 = vmatmul.mubr.bf16.gmra.mrb[0].mxu0 %v1628
        %v1852 = vpop.f32.mrb[0].mxu0
        %v1853 = vadd.f32 %v1544, %v1852
        %v1854 = vpop.f32.mrb[0].mxu0
        %v1855 = vpop.f32.mrb[0].mxu0
        %v1856 = vadd.f32 %v1544, %v1855
        %v1857 = vpop.f32.mrb[0].mxu0
        %1858 = vmatprep.mubr.bf16.mxu0 0
        %1859 = vmatmul.mubr.bf16.gmra.mrb[0].mxu0 %v1631
        %v1860 = vpop.f32.mrb[0].mxu0
        %v1861 = vadd.f32 %v1544, %v1860
        %v1862 = vpop.f32.mrb[0].mxu0
        %v1863 = vpop.f32.mrb[0].mxu0
        %v1864 = vadd.f32 %v1544, %v1863
        %v1865 = vpop.f32.mrb[0].mxu0
        %1866 = vmatprep.mubr.bf16.mxu0 0
        %1867 = vmatmul.mubr.bf16.gmra.mrb[0].mxu0 %v1634
        %v1868 = vpop.f32.mrb[0].mxu0
        %v1869 = vadd.f32 %v1544, %v1868
        %v1870 = vpop.f32.mrb[0].mxu0
        %v1871 = vpop.f32.mrb[0].mxu0
        %v1872 = vadd.f32 %v1544, %v1871
        %v1873 = vpop.f32.mrb[0].mxu0
        %1874 = vmatprep.mubr.bf16.mxu0 0
        %1875 = vmatmul.mubr.bf16.gmra.mrb[0].mxu0 %v1637
        %v1876 = vpop.f32.mrb[0].mxu0
        %v1877 = vadd.f32 %v1544, %v1876
        %v1878 = vpop.f32.mrb[0].mxu0
        %v1879 = vpop.f32.mrb[0].mxu0
        %v1880 = vadd.f32 %v1544, %v1879
        %v1881 = vpop.f32.mrb[0].mxu0
        %1882 = vmatprep.mubr.bf16.mxu0 0
        %1883 = vmatmul.mubr.bf16.gmra.mrb[0].mxu0 %v1640
        %v1884 = vpop.f32.mrb[0].mxu0
        %v1885 = vadd.f32 %v1544, %v1884
        %v1886 = vpop.f32.mrb[0].mxu0
        %v1887 = vpop.f32.mrb[0].mxu0
        %v1888 = vadd.f32 %v1544, %v1887
        %v1889 = vpop.f32.mrb[0].mxu0
        %1890 = vmatprep.mubr.bf16.mxu0 0
        %1891 = vmatmul.mubr.bf16.gmra.mrb[0].mxu0 %v1643
        %v1892 = vpop.f32.mrb[0].mxu0
        %v1893 = vadd.f32 %v1544, %v1892
        %v1894 = vpop.f32.mrb[0].mxu0
        %v1895 = vpop.f32.mrb[0].mxu0
        %v1896 = vadd.f32 %v1544, %v1895
        %v1897 = vpop.f32.mrb[0].mxu0
        %1898 = vmatprep.mubr.bf16.mxu0 0
        %1899 = vmatmul.mubr.bf16.gmra.mrb[0].mxu0 %v1646
        %v1900 = vpop.f32.mrb[0].mxu0
        %v1901 = vadd.f32 %v1544, %v1900
        %v1902 = vpop.f32.mrb[0].mxu0
        %v1903 = vpop.f32.mrb[0].mxu0
        %v1904 = vadd.f32 %v1544, %v1903
        %v1905 = vpop.f32.mrb[0].mxu0
        %1906 = vmatprep.mubr.bf16.mxu0 0
        %1907 = vmatmul.mubr.bf16.gmra.mrb[0].mxu0 %v1649
        %v1908 = vpop.f32.mrb[0].mxu0
        %v1909 = vadd.f32 %v1544, %v1908
        %v1910 = vpop.f32.mrb[0].mxu0
        %v1911 = vpop.f32.mrb[0].mxu0
        %v1912 = vadd.f32 %v1544, %v1911
        %v1913 = vpop.f32.mrb[0].mxu0
        %1914 = vmatprep.mubr.bf16.mxu0 0
        %1915 = vmatmul.mubr.bf16.gmra.mrb[0].mxu0 %v1652
        %v1916 = vpop.f32.mrb[0].mxu0
        %v1917 = vadd.f32 %v1544, %v1916
        %v1918 = vpop.f32.mrb[0].mxu0
        %v1919 = vpop.f32.mrb[0].mxu0
        %v1920 = vadd.f32 %v1544, %v1919
        %v1921 = vpop.f32.mrb[0].mxu0
        %1922 = vmatprep.mubr.bf16.mxu0 0
        %1923 = vmatmul.mubr.bf16.gmra.mrb[0].mxu0 %v1655
        %v1924 = vpop.f32.mrb[0].mxu0
        %v1925 = vadd.f32 %v1544, %v1924
        %v1926 = vpop.f32.mrb[0].mxu0
        %v1927 = vpop.f32.mrb[0].mxu0
        %v1928 = vadd.f32 %v1544, %v1927
        %v1929 = vpop.f32.mrb[0].mxu0
        %1930 = vmatprep.mubr.bf16.mxu0 0
        %1931 = vmatmul.mubr.bf16.gmra.mrb[0].mxu0 %v1658
        %v1932 = vpop.f32.mrb[0].mxu0
        %v1933 = vadd.f32 %v1544, %v1932
        %v1934 = vpop.f32.mrb[0].mxu0
        %v1935 = vpop.f32.mrb[0].mxu0
        %v1936 = vadd.f32 %v1544, %v1935
        %v1937 = vpop.f32.mrb[0].mxu0
        %1938 = vmatprep.mubr.bf16.mxu0 0
        %1939 = vmatmul.mubr.bf16.gmra.mrb[0].mxu0 %v1661
        %v1940 = vpop.f32.mrb[0].mxu0
        %v1941 = vadd.f32 %v1544, %v1940
        %v1942 = vpop.f32.mrb[0].mxu0
        %v1943 = vpop.f32.mrb[0].mxu0
        %v1944 = vadd.f32 %v1544, %v1943
        %v1945 = vpop.f32.mrb[0].mxu0
        %1946 = vmatprep.mubr.bf16.mxu0 0
        %1947 = vmatmul.mubr.bf16.gmra.mrb[0].mxu0 %v1664
        %v1948 = vpop.f32.mrb[0].mxu0
        %v1949 = vadd.f32 %v1544, %v1948
        %v1950 = vpop.f32.mrb[0].mxu0
        %v1951 = vpop.f32.mrb[0].mxu0
        %v1952 = vadd.f32 %v1544, %v1951
        %v1953 = vpop.f32.mrb[0].mxu0
        %1954 = vdwg.mxu0
        %v1955 = vmax.f32 %v1701, 0.0
        %v1956 = vmax.f32 %v1704, 0.0
        %v1957 = vmax.f32 %v1709, 0.0
        %v1958 = vmax.f32 %v1712, 0.0
        %v1959 = vmax.f32 %v1717, 0.0
        %v1960 = vmax.f32 %v1720, 0.0
        %v1961 = vmax.f32 %v1725, 0.0
        %v1962 = vmax.f32 %v1728, 0.0
        %v1963 = vmax.f32 %v1733, 0.0
        %v1964 = vmax.f32 %v1736, 0.0
        %v1965 = vmax.f32 %v1741, 0.0
        %v1966 = vmax.f32 %v1744, 0.0
        %v1967 = vmax.f32 %v1749, 0.0
        %v1968 = vmax.f32 %v1752, 0.0
        %v1969 = vmax.f32 %v1757, 0.0
        %v1970 = vmax.f32 %v1760, 0.0
        %v1971 = vmax.f32 %v1765, 0.0
        %v1972 = vmax.f32 %v1768, 0.0
        %v1973 = vmax.f32 %v1773, 0.0
        %v1974 = vmax.f32 %v1776, 0.0
        %v1975 = vmax.f32 %v1781, 0.0
        %v1976 = vmax.f32 %v1784, 0.0
        %v1977 = vmax.f32 %v1789, 0.0
        %v1978 = vmax.f32 %v1792, 0.0
        %v1979 = vmax.f32 %v1797, 0.0
        %v1980 = vmax.f32 %v1800, 0.0
        %v1981 = vmax.f32 %v1805, 0.0
        %v1982 = vmax.f32 %v1808, 0.0
        %v1983 = vmax.f32 %v1813, 0.0
        %v1984 = vmax.f32 %v1816, 0.0
        %v1985 = vmax.f32 %v1821, 0.0
        %v1986 = vmax.f32 %v1824, 0.0
        %v1987 = vmax.f32 %v1829, 0.0
        %v1988 = vmax.f32 %v1832, 0.0
        %v1989 = vmax.f32 %v1837, 0.0
        %v1990 = vmax.f32 %v1840, 0.0
        %v1991 = vmax.f32 %v1845, 0.0
        %v1992 = vmax.f32 %v1848, 0.0
        %v1993 = vmax.f32 %v1853, 0.0
        %v1994 = vmax.f32 %v1856, 0.0
        %v1995 = vmax.f32 %v1861, 0.0
        %v1996 = vmax.f32 %v1864, 0.0
        %v1997 = vmax.f32 %v1869, 0.0
        %v1998 = vmax.f32 %v1872, 0.0
        %v1999 = vmax.f32 %v1877, 0.0
        %v2000 = vmax.f32 %v1880, 0.0
        %v2001 = vmax.f32 %v1885, 0.0
        %v2002 = vmax.f32 %v1888, 0.0
        %v2003 = vmax.f32 %v1893, 0.0
        %v2004 = vmax.f32 %v1896, 0.0
        %v2005 = vmax.f32 %v1901, 0.0
        %v2006 = vmax.f32 %v1904, 0.0
        %v2007 = vmax.f32 %v1909, 0.0
        %v2008 = vmax.f32 %v1912, 0.0
        %v2009 = vmax.f32 %v1917, 0.0
        %v2010 = vmax.f32 %v1920, 0.0
        %v2011 = vmax.f32 %v1925, 0.0
        %v2012 = vmax.f32 %v1928, 0.0
        %v2013 = vmax.f32 %v1933, 0.0
        %v2014 = vmax.f32 %v1936, 0.0
        %v2015 = vmax.f32 %v1941, 0.0
        %v2016 = vmax.f32 %v1944, 0.0
        %v2017 = vmax.f32 %v1949, 0.0
        %v2018 = vmax.f32 %v1952, 0.0
        %v2019 = vlaneseq
        %v2020 = vand.u32 %v2019, 127
        %vm2021 = vcmp.lt.s32.totalorder %v2020, 10
        %v2022 = vsel %vm2021, %v1955, -1e+30
        %v2023 = vsel %vm2021, %v1956, -1e+30
        %v2024 = vsel %vm2021, %v1957, -1e+30
        %v2025 = vsel %vm2021, %v1958, -1e+30
        %v2026 = vsel %vm2021, %v1959, -1e+30
        %v2027 = vsel %vm2021, %v1960, -1e+30
        %v2028 = vsel %vm2021, %v1961, -1e+30
        %v2029 = vsel %vm2021, %v1962, -1e+30
        %v2030 = vsel %vm2021, %v1963, -1e+30
        %v2031 = vsel %vm2021, %v1964, -1e+30
        %v2032 = vsel %vm2021, %v1965, -1e+30
        %v2033 = vsel %vm2021, %v1966, -1e+30
        %v2034 = vsel %vm2021, %v1967, -1e+30
        %v2035 = vsel %vm2021, %v1968, -1e+30
        %v2036 = vsel %vm2021, %v1969, -1e+30
        %v2037 = vsel %vm2021, %v1970, -1e+30
        %v2038 = vsel %vm2021, %v1971, -1e+30
        %v2039 = vsel %vm2021, %v1972, -1e+30
        %v2040 = vsel %vm2021, %v1973, -1e+30
        %v2041 = vsel %vm2021, %v1974, -1e+30
        %v2042 = vsel %vm2021, %v1975, -1e+30
        %v2043 = vsel %vm2021, %v1976, -1e+30
        %v2044 = vsel %vm2021, %v1977, -1e+30
        %v2045 = vsel %vm2021, %v1978, -1e+30
        %v2046 = vsel %vm2021, %v1979, -1e+30
        %v2047 = vsel %vm2021, %v1980, -1e+30
        %v2048 = vsel %vm2021, %v1981, -1e+30
        %v2049 = vsel %vm2021, %v1982, -1e+30
        %v2050 = vsel %vm2021, %v1983, -1e+30
        %v2051 = vsel %vm2021, %v1984, -1e+30
        %v2052 = vsel %vm2021, %v1985, -1e+30
        %v2053 = vsel %vm2021, %v1986, -1e+30
        %v2054 = vsel %vm2021, %v1987, -1e+30
        %v2055 = vsel %vm2021, %v1988, -1e+30
        %v2056 = vsel %vm2021, %v1989, -1e+30
        %v2057 = vsel %vm2021, %v1990, -1e+30
        %v2058 = vsel %vm2021, %v1991, -1e+30
        %v2059 = vsel %vm2021, %v1992, -1e+30
        %v2060 = vsel %vm2021, %v1993, -1e+30
        %v2061 = vsel %vm2021, %v1994, -1e+30
        %v2062 = vsel %vm2021, %v1995, -1e+30
        %v2063 = vsel %vm2021, %v1996, -1e+30
        %v2064 = vsel %vm2021, %v1997, -1e+30
        %v2065 = vsel %vm2021, %v1998, -1e+30
        %v2066 = vsel %vm2021, %v1999, -1e+30
        %v2067 = vsel %vm2021, %v2000, -1e+30
        %v2068 = vsel %vm2021, %v2001, -1e+30
        %v2069 = vsel %vm2021, %v2002, -1e+30
        %v2070 = vsel %vm2021, %v2003, -1e+30
        %v2071 = vsel %vm2021, %v2004, -1e+30
        %v2072 = vsel %vm2021, %v2005, -1e+30
        %v2073 = vsel %vm2021, %v2006, -1e+30
        %v2074 = vsel %vm2021, %v2007, -1e+30
        %v2075 = vsel %vm2021, %v2008, -1e+30
        %v2076 = vsel %vm2021, %v2009, -1e+30
        %v2077 = vsel %vm2021, %v2010, -1e+30
        %v2078 = vsel %vm2021, %v2011, -1e+30
        %v2079 = vsel %vm2021, %v2012, -1e+30
        %v2080 = vsel %vm2021, %v2013, -1e+30
        %v2081 = vsel %vm2021, %v2014, -1e+30
        %v2082 = vsel %vm2021, %v2015, -1e+30
        %v2083 = vsel %vm2021, %v2016, -1e+30
        %v2084 = vsel %vm2021, %v2017, -1e+30
        %v2085 = vsel %vm2021, %v2018, -1e+30
        %2086 = vmax.xlane.f32.xlu0 %v2022
        %v2087 = vpop.xlane.xlu0 %2086
        %2088 = vmax.xlane.f32.xlu0 %v2023
        %v2089 = vpop.xlane.xlu0 %2088
        %2090 = vmax.xlane.f32.xlu0 %v2024
        %v2091 = vpop.xlane.xlu0 %2090
        %2092 = vmax.xlane.f32.xlu0 %v2025
        %v2093 = vpop.xlane.xlu0 %2092
        %2094 = vmax.xlane.f32.xlu0 %v2026
        %v2095 = vpop.xlane.xlu0 %2094
        %2096 = vmax.xlane.f32.xlu0 %v2027
        %v2097 = vpop.xlane.xlu0 %2096
        %2098 = vmax.xlane.f32.xlu0 %v2028
        %v2099 = vpop.xlane.xlu0 %2098
        %2100 = vmax.xlane.f32.xlu0 %v2029
        %v2101 = vpop.xlane.xlu0 %2100
        %2102 = vmax.xlane.f32.xlu0 %v2030
        %v2103 = vpop.xlane.xlu0 %2102
        %2104 = vmax.xlane.f32.xlu0 %v2031
        %v2105 = vpop.xlane.xlu0 %2104
        %2106 = vmax.xlane.f32.xlu0 %v2032
        %v2107 = vpop.xlane.xlu0 %2106
        %2108 = vmax.xlane.f32.xlu0 %v2033
        %v2109 = vpop.xlane.xlu0 %2108
        %2110 = vmax.xlane.f32.xlu0 %v2034
        %v2111 = vpop.xlane.xlu0 %2110
        %2112 = vmax.xlane.f32.xlu0 %v2035
        %v2113 = vpop.xlane.xlu0 %2112
        %2114 = vmax.xlane.f32.xlu0 %v2036
        %v2115 = vpop.xlane.xlu0 %2114
        %2116 = vmax.xlane.f32.xlu0 %v2037
        %v2117 = vpop.xlane.xlu0 %2116
        %2118 = vmax.xlane.f32.xlu0 %v2038
        %v2119 = vpop.xlane.xlu0 %2118
        %2120 = vmax.xlane.f32.xlu0 %v2039
        %v2121 = vpop.xlane.xlu0 %2120
        %2122 = vmax.xlane.f32.xlu0 %v2040
        %v2123 = vpop.xlane.xlu0 %2122
        %2124 = vmax.xlane.f32.xlu0 %v2041
        %v2125 = vpop.xlane.xlu0 %2124
        %2126 = vmax.xlane.f32.xlu0 %v2042
        %v2127 = vpop.xlane.xlu0 %2126
        %2128 = vmax.xlane.f32.xlu0 %v2043
        %v2129 = vpop.xlane.xlu0 %2128
        %2130 = vmax.xlane.f32.xlu0 %v2044
        %v2131 = vpop.xlane.xlu0 %2130
        %2132 = vmax.xlane.f32.xlu0 %v2045
        %v2133 = vpop.xlane.xlu0 %2132
        %2134 = vmax.xlane.f32.xlu0 %v2046
        %v2135 = vpop.xlane.xlu0 %2134
        %2136 = vmax.xlane.f32.xlu0 %v2047
        %v2137 = vpop.xlane.xlu0 %2136
        %2138 = vmax.xlane.f32.xlu0 %v2048
        %v2139 = vpop.xlane.xlu0 %2138
        %2140 = vmax.xlane.f32.xlu0 %v2049
        %v2141 = vpop.xlane.xlu0 %2140
        %2142 = vmax.xlane.f32.xlu0 %v2050
        %v2143 = vpop.xlane.xlu0 %2142
        %2144 = vmax.xlane.f32.xlu0 %v2051
        %v2145 = vpop.xlane.xlu0 %2144
        %2146 = vmax.xlane.f32.xlu0 %v2052
        %v2147 = vpop.xlane.xlu0 %2146
        %2148 = vmax.xlane.f32.xlu0 %v2053
        %v2149 = vpop.xlane.xlu0 %2148
        %2150 = vmax.xlane.f32.xlu0 %v2054
        %v2151 = vpop.xlane.xlu0 %2150
        %2152 = vmax.xlane.f32.xlu0 %v2055
        %v2153 = vpop.xlane.xlu0 %2152
        %2154 = vmax.xlane.f32.xlu0 %v2056
        %v2155 = vpop.xlane.xlu0 %2154
        %2156 = vmax.xlane.f32.xlu0 %v2057
        %v2157 = vpop.xlane.xlu0 %2156
        %2158 = vmax.xlane.f32.xlu0 %v2058
        %v2159 = vpop.xlane.xlu0 %2158
        %2160 = vmax.xlane.f32.xlu0 %v2059
        %v2161 = vpop.xlane.xlu0 %2160
        %2162 = vmax.xlane.f32.xlu0 %v2060
        %v2163 = vpop.xlane.xlu0 %2162
        %2164 = vmax.xlane.f32.xlu0 %v2061
        %v2165 = vpop.xlane.xlu0 %2164
        %2166 = vmax.xlane.f32.xlu0 %v2062
        %v2167 = vpop.xlane.xlu0 %2166
        %2168 = vmax.xlane.f32.xlu0 %v2063
        %v2169 = vpop.xlane.xlu0 %2168
        %2170 = vmax.xlane.f32.xlu0 %v2064
        %v2171 = vpop.xlane.xlu0 %2170
        %2172 = vmax.xlane.f32.xlu0 %v2065
        %v2173 = vpop.xlane.xlu0 %2172
        %2174 = vmax.xlane.f32.xlu0 %v2066
        %v2175 = vpop.xlane.xlu0 %2174
        %2176 = vmax.xlane.f32.xlu0 %v2067
        %v2177 = vpop.xlane.xlu0 %2176
        %2178 = vmax.xlane.f32.xlu0 %v2068
        %v2179 = vpop.xlane.xlu0 %2178
        %2180 = vmax.xlane.f32.xlu0 %v2069
        %v2181 = vpop.xlane.xlu0 %2180
        %2182 = vmax.xlane.f32.xlu0 %v2070
        %v2183 = vpop.xlane.xlu0 %2182
        %2184 = vmax.xlane.f32.xlu0 %v2071
        %v2185 = vpop.xlane.xlu0 %2184
        %2186 = vmax.xlane.f32.xlu0 %v2072
        %v2187 = vpop.xlane.xlu0 %2186
        %2188 = vmax.xlane.f32.xlu0 %v2073
        %v2189 = vpop.xlane.xlu0 %2188
        %2190 = vmax.xlane.f32.xlu0 %v2074
        %v2191 = vpop.xlane.xlu0 %2190
        %2192 = vmax.xlane.f32.xlu0 %v2075
        %v2193 = vpop.xlane.xlu0 %2192
        %2194 = vmax.xlane.f32.xlu0 %v2076
        %v2195 = vpop.xlane.xlu0 %2194
        %2196 = vmax.xlane.f32.xlu0 %v2077
        %v2197 = vpop.xlane.xlu0 %2196
        %2198 = vmax.xlane.f32.xlu0 %v2078
        %v2199 = vpop.xlane.xlu0 %2198
        %2200 = vmax.xlane.f32.xlu0 %v2079
        %v2201 = vpop.xlane.xlu0 %2200
        %2202 = vmax.xlane.f32.xlu0 %v2080
        %v2203 = vpop.xlane.xlu0 %2202
        %2204 = vmax.xlane.f32.xlu0 %v2081
        %v2205 = vpop.xlane.xlu0 %2204
        %2206 = vmax.xlane.f32.xlu0 %v2082
        %v2207 = vpop.xlane.xlu0 %2206
        %2208 = vmax.xlane.f32.xlu0 %v2083
        %v2209 = vpop.xlane.xlu0 %2208
        %2210 = vmax.xlane.f32.xlu0 %v2084
        %v2211 = vpop.xlane.xlu0 %2210
        %2212 = vmax.xlane.f32.xlu0 %v2085
        %v2213 = vpop.xlane.xlu0 %2212
        %v2214 = vsub.f32 %v2022, %v2087
        %v2215 = vsub.f32 %v2023, %v2089
        %v2216 = vsub.f32 %v2024, %v2091
        %v2217 = vsub.f32 %v2025, %v2093
        %v2218 = vsub.f32 %v2026, %v2095
        %v2219 = vsub.f32 %v2027, %v2097
        %v2220 = vsub.f32 %v2028, %v2099
        %v2221 = vsub.f32 %v2029, %v2101
        %v2222 = vsub.f32 %v2030, %v2103
        %v2223 = vsub.f32 %v2031, %v2105
        %v2224 = vsub.f32 %v2032, %v2107
        %v2225 = vsub.f32 %v2033, %v2109
        %v2226 = vsub.f32 %v2034, %v2111
        %v2227 = vsub.f32 %v2035, %v2113
        %v2228 = vsub.f32 %v2036, %v2115
        %v2229 = vsub.f32 %v2037, %v2117
        %v2230 = vsub.f32 %v2038, %v2119
        %v2231 = vsub.f32 %v2039, %v2121
        %v2232 = vsub.f32 %v2040, %v2123
        %v2233 = vsub.f32 %v2041, %v2125
        %v2234 = vsub.f32 %v2042, %v2127
        %v2235 = vsub.f32 %v2043, %v2129
        %v2236 = vsub.f32 %v2044, %v2131
        %v2237 = vsub.f32 %v2045, %v2133
        %v2238 = vsub.f32 %v2046, %v2135
        %v2239 = vsub.f32 %v2047, %v2137
        %v2240 = vsub.f32 %v2048, %v2139
        %v2241 = vsub.f32 %v2049, %v2141
        %v2242 = vsub.f32 %v2050, %v2143
        %v2243 = vsub.f32 %v2051, %v2145
        %v2244 = vsub.f32 %v2052, %v2147
        %v2245 = vsub.f32 %v2053, %v2149
        %v2246 = vsub.f32 %v2054, %v2151
        %v2247 = vsub.f32 %v2055, %v2153
        %v2248 = vsub.f32 %v2056, %v2155
        %v2249 = vsub.f32 %v2057, %v2157
        %v2250 = vsub.f32 %v2058, %v2159
        %v2251 = vsub.f32 %v2059, %v2161
        %v2252 = vsub.f32 %v2060, %v2163
        %v2253 = vsub.f32 %v2061, %v2165
        %v2254 = vsub.f32 %v2062, %v2167
        %v2255 = vsub.f32 %v2063, %v2169
        %v2256 = vsub.f32 %v2064, %v2171
        %v2257 = vsub.f32 %v2065, %v2173
        %v2258 = vsub.f32 %v2066, %v2175
        %v2259 = vsub.f32 %v2067, %v2177
        %v2260 = vsub.f32 %v2068, %v2179
        %v2261 = vsub.f32 %v2069, %v2181
        %v2262 = vsub.f32 %v2070, %v2183
        %v2263 = vsub.f32 %v2071, %v2185
        %v2264 = vsub.f32 %v2072, %v2187
        %v2265 = vsub.f32 %v2073, %v2189
        %v2266 = vsub.f32 %v2074, %v2191
        %v2267 = vsub.f32 %v2075, %v2193
        %v2268 = vsub.f32 %v2076, %v2195
        %v2269 = vsub.f32 %v2077, %v2197
        %v2270 = vsub.f32 %v2078, %v2199
        %v2271 = vsub.f32 %v2079, %v2201
        %v2272 = vsub.f32 %v2080, %v2203
        %v2273 = vsub.f32 %v2081, %v2205
        %v2274 = vsub.f32 %v2082, %v2207
        %v2275 = vsub.f32 %v2083, %v2209
        %v2276 = vsub.f32 %v2084, %v2211
        %v2277 = vsub.f32 %v2085, %v2213
        %v2278 = vmul.f32 %v2214, 1.442695
        %v2279 = vpow.pop %v2278
        %v2280 = vmul.f32 %v2215, 1.442695
        %v2281 = vpow.pop %v2280
        %v2282 = vmul.f32 %v2216, 1.442695
        %v2283 = vpow.pop %v2282
        %v2284 = vmul.f32 %v2217, 1.442695
        %v2285 = vpow.pop %v2284
        %v2286 = vmul.f32 %v2218, 1.442695
        %v2287 = vpow.pop %v2286
        %v2288 = vmul.f32 %v2219, 1.442695
        %v2289 = vpow.pop %v2288
        %v2290 = vmul.f32 %v2220, 1.442695
        %v2291 = vpow.pop %v2290
        %v2292 = vmul.f32 %v2221, 1.442695
        %v2293 = vpow.pop %v2292
        %v2294 = vmul.f32 %v2222, 1.442695
        %v2295 = vpow.pop %v2294
        %v2296 = vmul.f32 %v2223, 1.442695
        %v2297 = vpow.pop %v2296
        %v2298 = vmul.f32 %v2224, 1.442695
        %v2299 = vpow.pop %v2298
        %v2300 = vmul.f32 %v2225, 1.442695
        %v2301 = vpow.pop %v2300
        %v2302 = vmul.f32 %v2226, 1.442695
        %v2303 = vpow.pop %v2302
        %v2304 = vmul.f32 %v2227, 1.442695
        %v2305 = vpow.pop %v2304
        %v2306 = vmul.f32 %v2228, 1.442695
        %v2307 = vpow.pop %v2306
        %v2308 = vmul.f32 %v2229, 1.442695
        %v2309 = vpow.pop %v2308
        %v2310 = vmul.f32 %v2230, 1.442695
        %v2311 = vpow.pop %v2310
        %v2312 = vmul.f32 %v2231, 1.442695
        %v2313 = vpow.pop %v2312
        %v2314 = vmul.f32 %v2232, 1.442695
        %v2315 = vpow.pop %v2314
        %v2316 = vmul.f32 %v2233, 1.442695
        %v2317 = vpow.pop %v2316
        %v2318 = vmul.f32 %v2234, 1.442695
        %v2319 = vpow.pop %v2318
        %v2320 = vmul.f32 %v2235, 1.442695
        %v2321 = vpow.pop %v2320
        %v2322 = vmul.f32 %v2236, 1.442695
        %v2323 = vpow.pop %v2322
        %v2324 = vmul.f32 %v2237, 1.442695
        %v2325 = vpow.pop %v2324
        %v2326 = vmul.f32 %v2238, 1.442695
        %v2327 = vpow.pop %v2326
        %v2328 = vmul.f32 %v2239, 1.442695
        %v2329 = vpow.pop %v2328
        %v2330 = vmul.f32 %v2240, 1.442695
        %v2331 = vpow.pop %v2330
        %v2332 = vmul.f32 %v2241, 1.442695
        %v2333 = vpow.pop %v2332
        %v2334 = vmul.f32 %v2242, 1.442695
        %v2335 = vpow.pop %v2334
        %v2336 = vmul.f32 %v2243, 1.442695
        %v2337 = vpow.pop %v2336
        %v2338 = vmul.f32 %v2244, 1.442695
        %v2339 = vpow.pop %v2338
        %v2340 = vmul.f32 %v2245, 1.442695
        %v2341 = vpow.pop %v2340
        %v2342 = vmul.f32 %v2246, 1.442695
        %v2343 = vpow.pop %v2342
        %v2344 = vmul.f32 %v2247, 1.442695
        %v2345 = vpow.pop %v2344
        %v2346 = vmul.f32 %v2248, 1.442695
        %v2347 = vpow.pop %v2346
        %v2348 = vmul.f32 %v2249, 1.442695
        %v2349 = vpow.pop %v2348
        %v2350 = vmul.f32 %v2250, 1.442695
        %v2351 = vpow.pop %v2350
        %v2352 = vmul.f32 %v2251, 1.442695
        %v2353 = vpow.pop %v2352
        %v2354 = vmul.f32 %v2252, 1.442695
        %v2355 = vpow.pop %v2354
        %v2356 = vmul.f32 %v2253, 1.442695
        %v2357 = vpow.pop %v2356
        %v2358 = vmul.f32 %v2254, 1.442695
        %v2359 = vpow.pop %v2358
        %v2360 = vmul.f32 %v2255, 1.442695
        %v2361 = vpow.pop %v2360
        %v2362 = vmul.f32 %v2256, 1.442695
        %v2363 = vpow.pop %v2362
        %v2364 = vmul.f32 %v2257, 1.442695
        %v2365 = vpow.pop %v2364
        %v2366 = vmul.f32 %v2258, 1.442695
        %v2367 = vpow.pop %v2366
        %v2368 = vmul.f32 %v2259, 1.442695
        %v2369 = vpow.pop %v2368
        %v2370 = vmul.f32 %v2260, 1.442695
        %v2371 = vpow.pop %v2370
        %v2372 = vmul.f32 %v2261, 1.442695
        %v2373 = vpow.pop %v2372
        %v2374 = vmul.f32 %v2262, 1.442695
        %v2375 = vpow.pop %v2374
        %v2376 = vmul.f32 %v2263, 1.442695
        %v2377 = vpow.pop %v2376
        %v2378 = vmul.f32 %v2264, 1.442695
        %v2379 = vpow.pop %v2378
        %v2380 = vmul.f32 %v2265, 1.442695
        %v2381 = vpow.pop %v2380
        %v2382 = vmul.f32 %v2266, 1.442695
        %v2383 = vpow.pop %v2382
        %v2384 = vmul.f32 %v2267, 1.442695
        %v2385 = vpow.pop %v2384
        %v2386 = vmul.f32 %v2268, 1.442695
        %v2387 = vpow.pop %v2386
        %v2388 = vmul.f32 %v2269, 1.442695
        %v2389 = vpow.pop %v2388
        %v2390 = vmul.f32 %v2270, 1.442695
        %v2391 = vpow.pop %v2390
        %v2392 = vmul.f32 %v2271, 1.442695
        %v2393 = vpow.pop %v2392
        %v2394 = vmul.f32 %v2272, 1.442695
        %v2395 = vpow.pop %v2394
        %v2396 = vmul.f32 %v2273, 1.442695
        %v2397 = vpow.pop %v2396
        %v2398 = vmul.f32 %v2274, 1.442695
        %v2399 = vpow.pop %v2398
        %v2400 = vmul.f32 %v2275, 1.442695
        %v2401 = vpow.pop %v2400
        %v2402 = vmul.f32 %v2276, 1.442695
        %v2403 = vpow.pop %v2402
        %v2404 = vmul.f32 %v2277, 1.442695
        %v2405 = vpow.pop %v2404
        %2406 = vadd.xlane.f32.xlu0 %v2279
        %v2407 = vpop.xlane.xlu0 %2406
        %2408 = vadd.xlane.f32.xlu0 %v2281
        %v2409 = vpop.xlane.xlu0 %2408
        %2410 = vadd.xlane.f32.xlu0 %v2283
        %v2411 = vpop.xlane.xlu0 %2410
        %2412 = vadd.xlane.f32.xlu0 %v2285
        %v2413 = vpop.xlane.xlu0 %2412
        %2414 = vadd.xlane.f32.xlu0 %v2287
        %v2415 = vpop.xlane.xlu0 %2414
        %2416 = vadd.xlane.f32.xlu0 %v2289
        %v2417 = vpop.xlane.xlu0 %2416
        %2418 = vadd.xlane.f32.xlu0 %v2291
        %v2419 = vpop.xlane.xlu0 %2418
        %2420 = vadd.xlane.f32.xlu0 %v2293
        %v2421 = vpop.xlane.xlu0 %2420
        %2422 = vadd.xlane.f32.xlu0 %v2295
        %v2423 = vpop.xlane.xlu0 %2422
        %2424 = vadd.xlane.f32.xlu0 %v2297
        %v2425 = vpop.xlane.xlu0 %2424
        %2426 = vadd.xlane.f32.xlu0 %v2299
        %v2427 = vpop.xlane.xlu0 %2426
        %2428 = vadd.xlane.f32.xlu0 %v2301
        %v2429 = vpop.xlane.xlu0 %2428
        %2430 = vadd.xlane.f32.xlu0 %v2303
        %v2431 = vpop.xlane.xlu0 %2430
        %2432 = vadd.xlane.f32.xlu0 %v2305
        %v2433 = vpop.xlane.xlu0 %2432
        %2434 = vadd.xlane.f32.xlu0 %v2307
        %v2435 = vpop.xlane.xlu0 %2434
        %2436 = vadd.xlane.f32.xlu0 %v2309
        %v2437 = vpop.xlane.xlu0 %2436
        %2438 = vadd.xlane.f32.xlu0 %v2311
        %v2439 = vpop.xlane.xlu0 %2438
        %2440 = vadd.xlane.f32.xlu0 %v2313
        %v2441 = vpop.xlane.xlu0 %2440
        %2442 = vadd.xlane.f32.xlu0 %v2315
        %v2443 = vpop.xlane.xlu0 %2442
        %2444 = vadd.xlane.f32.xlu0 %v2317
        %v2445 = vpop.xlane.xlu0 %2444
        %2446 = vadd.xlane.f32.xlu0 %v2319
        %v2447 = vpop.xlane.xlu0 %2446
        %2448 = vadd.xlane.f32.xlu0 %v2321
        %v2449 = vpop.xlane.xlu0 %2448
        %2450 = vadd.xlane.f32.xlu0 %v2323
        %v2451 = vpop.xlane.xlu0 %2450
        %2452 = vadd.xlane.f32.xlu0 %v2325
        %v2453 = vpop.xlane.xlu0 %2452
        %2454 = vadd.xlane.f32.xlu0 %v2327
        %v2455 = vpop.xlane.xlu0 %2454
        %2456 = vadd.xlane.f32.xlu0 %v2329
        %v2457 = vpop.xlane.xlu0 %2456
        %2458 = vadd.xlane.f32.xlu0 %v2331
        %v2459 = vpop.xlane.xlu0 %2458
        %2460 = vadd.xlane.f32.xlu0 %v2333
        %v2461 = vpop.xlane.xlu0 %2460
        %2462 = vadd.xlane.f32.xlu0 %v2335
        %v2463 = vpop.xlane.xlu0 %2462
        %2464 = vadd.xlane.f32.xlu0 %v2337
        %v2465 = vpop.xlane.xlu0 %2464
        %2466 = vadd.xlane.f32.xlu0 %v2339
        %v2467 = vpop.xlane.xlu0 %2466
        %2468 = vadd.xlane.f32.xlu0 %v2341
        %v2469 = vpop.xlane.xlu0 %2468
        %2470 = vadd.xlane.f32.xlu0 %v2343
        %v2471 = vpop.xlane.xlu0 %2470
        %2472 = vadd.xlane.f32.xlu0 %v2345
        %v2473 = vpop.xlane.xlu0 %2472
        %2474 = vadd.xlane.f32.xlu0 %v2347
        %v2475 = vpop.xlane.xlu0 %2474
        %2476 = vadd.xlane.f32.xlu0 %v2349
        %v2477 = vpop.xlane.xlu0 %2476
        %2478 = vadd.xlane.f32.xlu0 %v2351
        %v2479 = vpop.xlane.xlu0 %2478
        %2480 = vadd.xlane.f32.xlu0 %v2353
        %v2481 = vpop.xlane.xlu0 %2480
        %2482 = vadd.xlane.f32.xlu0 %v2355
        %v2483 = vpop.xlane.xlu0 %2482
        %2484 = vadd.xlane.f32.xlu0 %v2357
        %v2485 = vpop.xlane.xlu0 %2484
        %2486 = vadd.xlane.f32.xlu0 %v2359
        %v2487 = vpop.xlane.xlu0 %2486
        %2488 = vadd.xlane.f32.xlu0 %v2361
        %v2489 = vpop.xlane.xlu0 %2488
        %2490 = vadd.xlane.f32.xlu0 %v2363
        %v2491 = vpop.xlane.xlu0 %2490
        %2492 = vadd.xlane.f32.xlu0 %v2365
        %v2493 = vpop.xlane.xlu0 %2492
        %2494 = vadd.xlane.f32.xlu0 %v2367
        %v2495 = vpop.xlane.xlu0 %2494
        %2496 = vadd.xlane.f32.xlu0 %v2369
        %v2497 = vpop.xlane.xlu0 %2496
        %2498 = vadd.xlane.f32.xlu0 %v2371
        %v2499 = vpop.xlane.xlu0 %2498
        %2500 = vadd.xlane.f32.xlu0 %v2373
        %v2501 = vpop.xlane.xlu0 %2500
        %2502 = vadd.xlane.f32.xlu0 %v2375
        %v2503 = vpop.xlane.xlu0 %2502
        %2504 = vadd.xlane.f32.xlu0 %v2377
        %v2505 = vpop.xlane.xlu0 %2504
        %2506 = vadd.xlane.f32.xlu0 %v2379
        %v2507 = vpop.xlane.xlu0 %2506
        %2508 = vadd.xlane.f32.xlu0 %v2381
        %v2509 = vpop.xlane.xlu0 %2508
        %2510 = vadd.xlane.f32.xlu0 %v2383
        %v2511 = vpop.xlane.xlu0 %2510
        %2512 = vadd.xlane.f32.xlu0 %v2385
        %v2513 = vpop.xlane.xlu0 %2512
        %2514 = vadd.xlane.f32.xlu0 %v2387
        %v2515 = vpop.xlane.xlu0 %2514
        %2516 = vadd.xlane.f32.xlu0 %v2389
        %v2517 = vpop.xlane.xlu0 %2516
        %2518 = vadd.xlane.f32.xlu0 %v2391
        %v2519 = vpop.xlane.xlu0 %2518
        %2520 = vadd.xlane.f32.xlu0 %v2393
        %v2521 = vpop.xlane.xlu0 %2520
        %2522 = vadd.xlane.f32.xlu0 %v2395
        %v2523 = vpop.xlane.xlu0 %2522
        %2524 = vadd.xlane.f32.xlu0 %v2397
        %v2525 = vpop.xlane.xlu0 %2524
        %2526 = vadd.xlane.f32.xlu0 %v2399
        %v2527 = vpop.xlane.xlu0 %2526
        %2528 = vadd.xlane.f32.xlu0 %v2401
        %v2529 = vpop.xlane.xlu0 %2528
        %2530 = vadd.xlane.f32.xlu0 %v2403
        %v2531 = vpop.xlane.xlu0 %2530
        %2532 = vadd.xlane.f32.xlu0 %v2405
        %v2533 = vpop.xlane.xlu0 %2532
        %v2534 = vrcp.pop %v2407
        %v2535 = vrcp.pop %v2409
        %v2536 = vrcp.pop %v2411
        %v2537 = vrcp.pop %v2413
        %v2538 = vrcp.pop %v2415
        %v2539 = vrcp.pop %v2417
        %v2540 = vrcp.pop %v2419
        %v2541 = vrcp.pop %v2421
        %v2542 = vrcp.pop %v2423
        %v2543 = vrcp.pop %v2425
        %v2544 = vrcp.pop %v2427
        %v2545 = vrcp.pop %v2429
        %v2546 = vrcp.pop %v2431
        %v2547 = vrcp.pop %v2433
        %v2548 = vrcp.pop %v2435
        %v2549 = vrcp.pop %v2437
        %v2550 = vrcp.pop %v2439
        %v2551 = vrcp.pop %v2441
        %v2552 = vrcp.pop %v2443
        %v2553 = vrcp.pop %v2445
        %v2554 = vrcp.pop %v2447
        %v2555 = vrcp.pop %v2449
        %v2556 = vrcp.pop %v2451
        %v2557 = vrcp.pop %v2453
        %v2558 = vrcp.pop %v2455
        %v2559 = vrcp.pop %v2457
        %v2560 = vrcp.pop %v2459
        %v2561 = vrcp.pop %v2461
        %v2562 = vrcp.pop %v2463
        %v2563 = vrcp.pop %v2465
        %v2564 = vrcp.pop %v2467
        %v2565 = vrcp.pop %v2469
        %v2566 = vrcp.pop %v2471
        %v2567 = vrcp.pop %v2473
        %v2568 = vrcp.pop %v2475
        %v2569 = vrcp.pop %v2477
        %v2570 = vrcp.pop %v2479
        %v2571 = vrcp.pop %v2481
        %v2572 = vrcp.pop %v2483
        %v2573 = vrcp.pop %v2485
        %v2574 = vrcp.pop %v2487
        %v2575 = vrcp.pop %v2489
        %v2576 = vrcp.pop %v2491
        %v2577 = vrcp.pop %v2493
        %v2578 = vrcp.pop %v2495
        %v2579 = vrcp.pop %v2497
        %v2580 = vrcp.pop %v2499
        %v2581 = vrcp.pop %v2501
        %v2582 = vrcp.pop %v2503
        %v2583 = vrcp.pop %v2505
        %v2584 = vrcp.pop %v2507
        %v2585 = vrcp.pop %v2509
        %v2586 = vrcp.pop %v2511
        %v2587 = vrcp.pop %v2513
        %v2588 = vrcp.pop %v2515
        %v2589 = vrcp.pop %v2517
        %v2590 = vrcp.pop %v2519
        %v2591 = vrcp.pop %v2521
        %v2592 = vrcp.pop %v2523
        %v2593 = vrcp.pop %v2525
        %v2594 = vrcp.pop %v2527
        %v2595 = vrcp.pop %v2529
        %v2596 = vrcp.pop %v2531
        %v2597 = vrcp.pop %v2533
        %v2598 = vmul.f32 %v2279, %v2534
        %v2599 = vmul.f32 %v2281, %v2535
        %v2600 = vmul.f32 %v2283, %v2536
        %v2601 = vmul.f32 %v2285, %v2537
        %v2602 = vmul.f32 %v2287, %v2538
        %v2603 = vmul.f32 %v2289, %v2539
        %v2604 = vmul.f32 %v2291, %v2540
        %v2605 = vmul.f32 %v2293, %v2541
        %v2606 = vmul.f32 %v2295, %v2542
        %v2607 = vmul.f32 %v2297, %v2543
        %v2608 = vmul.f32 %v2299, %v2544
        %v2609 = vmul.f32 %v2301, %v2545
        %v2610 = vmul.f32 %v2303, %v2546
        %v2611 = vmul.f32 %v2305, %v2547
        %v2612 = vmul.f32 %v2307, %v2548
        %v2613 = vmul.f32 %v2309, %v2549
        %v2614 = vmul.f32 %v2311, %v2550
        %v2615 = vmul.f32 %v2313, %v2551
        %v2616 = vmul.f32 %v2315, %v2552
        %v2617 = vmul.f32 %v2317, %v2553
        %v2618 = vmul.f32 %v2319, %v2554
        %v2619 = vmul.f32 %v2321, %v2555
        %v2620 = vmul.f32 %v2323, %v2556
        %v2621 = vmul.f32 %v2325, %v2557
        %v2622 = vmul.f32 %v2327, %v2558
        %v2623 = vmul.f32 %v2329, %v2559
        %v2624 = vmul.f32 %v2331, %v2560
        %v2625 = vmul.f32 %v2333, %v2561
        %v2626 = vmul.f32 %v2335, %v2562
        %v2627 = vmul.f32 %v2337, %v2563
        %v2628 = vmul.f32 %v2339, %v2564
        %v2629 = vmul.f32 %v2341, %v2565
        %v2630 = vmul.f32 %v2343, %v2566
        %v2631 = vmul.f32 %v2345, %v2567
        %v2632 = vmul.f32 %v2347, %v2568
        %v2633 = vmul.f32 %v2349, %v2569
        %v2634 = vmul.f32 %v2351, %v2570
        %v2635 = vmul.f32 %v2353, %v2571
        %v2636 = vmul.f32 %v2355, %v2572
        %v2637 = vmul.f32 %v2357, %v2573
        %v2638 = vmul.f32 %v2359, %v2574
        %v2639 = vmul.f32 %v2361, %v2575
        %v2640 = vmul.f32 %v2363, %v2576
        %v2641 = vmul.f32 %v2365, %v2577
        %v2642 = vmul.f32 %v2367, %v2578
        %v2643 = vmul.f32 %v2369, %v2579
        %v2644 = vmul.f32 %v2371, %v2580
        %v2645 = vmul.f32 %v2373, %v2581
        %v2646 = vmul.f32 %v2375, %v2582
        %v2647 = vmul.f32 %v2377, %v2583
        %v2648 = vmul.f32 %v2379, %v2584
        %v2649 = vmul.f32 %v2381, %v2585
        %v2650 = vmul.f32 %v2383, %v2586
        %v2651 = vmul.f32 %v2385, %v2587
        %v2652 = vmul.f32 %v2387, %v2588
        %v2653 = vmul.f32 %v2389, %v2589
        %v2654 = vmul.f32 %v2391, %v2590
        %v2655 = vmul.f32 %v2393, %v2591
        %v2656 = vmul.f32 %v2395, %v2592
        %v2657 = vmul.f32 %v2397, %v2593
        %v2658 = vmul.f32 %v2399, %v2594
        %v2659 = vmul.f32 %v2401, %v2595
        %v2660 = vmul.f32 %v2403, %v2596
        %v2661 = vmul.f32 %v2405, %v2597
        %2662 = vst [vmem:[%s272] sm:$0xff] %v2598
        %2663 = vst [vmem:[%s272 + $0x8] sm:$0xff] %v2599
        %2664 = vst [vmem:[%s272 + $0x10] sm:$0xff] %v2600
        %2665 = vst [vmem:[%s272 + $0x18] sm:$0xff] %v2601
        %2666 = vst [vmem:[%s272 + $0x20] sm:$0xff] %v2602
        %2667 = vst [vmem:[%s272 + $0x28] sm:$0xff] %v2603
        %2668 = vst [vmem:[%s272 + $0x30] sm:$0xff] %v2604
        %2669 = vst [vmem:[%s272 + $0x38] sm:$0xff] %v2605
        %2670 = vst [vmem:[%s272 + $0x40] sm:$0xff] %v2606
        %2671 = vst [vmem:[%s272 + $0x48] sm:$0xff] %v2607
        %2672 = vst [vmem:[%s272 + $0x50] sm:$0xff] %v2608
        %2673 = vst [vmem:[%s272 + $0x58] sm:$0xff] %v2609
        %2674 = vst [vmem:[%s272 + $0x60] sm:$0xff] %v2610
        %2675 = vst [vmem:[%s272 + $0x68] sm:$0xff] %v2611
        %2676 = vst [vmem:[%s272 + $0x70] sm:$0xff] %v2612
        %2677 = vst [vmem:[%s272 + $0x78] sm:$0xff] %v2613
        %2678 = vst [vmem:[%s272 + $0x80] sm:$0xff] %v2614
        %2679 = vst [vmem:[%s272 + $0x88] sm:$0xff] %v2615
        %2680 = vst [vmem:[%s272 + $0x90] sm:$0xff] %v2616
        %2681 = vst [vmem:[%s272 + $0x98] sm:$0xff] %v2617
        %2682 = vst [vmem:[%s272 + $0xa0] sm:$0xff] %v2618
        %2683 = vst [vmem:[%s272 + $0xa8] sm:$0xff] %v2619
        %2684 = vst [vmem:[%s272 + $0xb0] sm:$0xff] %v2620
        %2685 = vst [vmem:[%s272 + $0xb8] sm:$0xff] %v2621
        %2686 = vst [vmem:[%s272 + $0xc0] sm:$0xff] %v2622
        %2687 = vst [vmem:[%s272 + $0xc8] sm:$0xff] %v2623
        %2688 = vst [vmem:[%s272 + $0xd0] sm:$0xff] %v2624
        %2689 = vst [vmem:[%s272 + $0xd8] sm:$0xff] %v2625
        %2690 = vst [vmem:[%s272 + $0xe0] sm:$0xff] %v2626
        %2691 = vst [vmem:[%s272 + $0xe8] sm:$0xff] %v2627
        %2692 = vst [vmem:[%s272 + $0xf0] sm:$0xff] %v2628
        %2693 = vst [vmem:[%s272 + $0xf8] sm:$0xff] %v2629
        %2694 = vst [vmem:[%s272 + $0x100] sm:$0xff] %v2630
        %2695 = vst [vmem:[%s272 + $0x108] sm:$0xff] %v2631
        %2696 = vst [vmem:[%s272 + $0x110] sm:$0xff] %v2632
        %2697 = vst [vmem:[%s272 + $0x118] sm:$0xff] %v2633
        %2698 = vst [vmem:[%s272 + $0x120] sm:$0xff] %v2634
        %2699 = vst [vmem:[%s272 + $0x128] sm:$0xff] %v2635
        %2700 = vst [vmem:[%s272 + $0x130] sm:$0xff] %v2636
        %2701 = vst [vmem:[%s272 + $0x138] sm:$0xff] %v2637
        %2702 = vst [vmem:[%s272 + $0x140] sm:$0xff] %v2638
        %2703 = vst [vmem:[%s272 + $0x148] sm:$0xff] %v2639
        %2704 = vst [vmem:[%s272 + $0x150] sm:$0xff] %v2640
        %2705 = vst [vmem:[%s272 + $0x158] sm:$0xff] %v2641
        %2706 = vst [vmem:[%s272 + $0x160] sm:$0xff] %v2642
        %2707 = vst [vmem:[%s272 + $0x168] sm:$0xff] %v2643
        %2708 = vst [vmem:[%s272 + $0x170] sm:$0xff] %v2644
        %2709 = vst [vmem:[%s272 + $0x178] sm:$0xff] %v2645
        %2710 = vst [vmem:[%s272 + $0x180] sm:$0xff] %v2646
        %2711 = vst [vmem:[%s272 + $0x188] sm:$0xff] %v2647
        %2712 = vst [vmem:[%s272 + $0x190] sm:$0xff] %v2648
        %2713 = vst [vmem:[%s272 + $0x198] sm:$0xff] %v2649
        %2714 = vst [vmem:[%s272 + $0x1a0] sm:$0xff] %v2650
        %2715 = vst [vmem:[%s272 + $0x1a8] sm:$0xff] %v2651
        %2716 = vst [vmem:[%s272 + $0x1b0] sm:$0xff] %v2652
        %2717 = vst [vmem:[%s272 + $0x1b8] sm:$0xff] %v2653
        %2718 = vst [vmem:[%s272 + $0x1c0] sm:$0xff] %v2654
        %2719 = vst [vmem:[%s272 + $0x1c8] sm:$0xff] %v2655
        %2720 = vst [vmem:[%s272 + $0x1d0] sm:$0xff] %v2656
        %2721 = vst [vmem:[%s272 + $0x1d8] sm:$0xff] %v2657
        %2722 = vst [vmem:[%s272 + $0x1e0] sm:$0xff] %v2658
        %2723 = vst [vmem:[%s272 + $0x1e8] sm:$0xff] %v2659
        %2724 = vst [vmem:[%s272 + $0x1f0] sm:$0xff] %v2660
        %2725 = vst [vmem:[%s272 + $0x1f8] sm:$0xff] %v2661
        %s2726 = sand.u32 %s181, 1
        %s2727 = scalar_lea.sflag [#allocation3], %s2726
        %s2728 = sand.u32 %s181, 1
        %s2729 = smul.addr %s2728, 512
        %s2730 = scalar_lea.vmem [#allocation2], %s2729
        // Predicated region
        $region49: #{tpu_custom_call.1} parent=47 // pred_check
          %p2731 = pneg %p191
        $region50: #{tpu_custom_call.1} parent=47 // pred_check_branch
          %2733 = sbr.rel (%p2731) target = $region52
        $region51: #{tpu_custom_call.1} parent=47 // pred_region
          %s2734 = smul.u32 64, %s21
          %s2736 = ssub.s32 8192, 8192
          %2737 = vsyncadd %s2727, %s2736
          %s2738 = smul.addr %s2734, 128
          %s2739 = scalar_lea.hbm %s7, %s2738
          %s2740 = sshll.u32 %s2730, 4
          %s2741 = int_to_ptr.vmem [resolvable:$true] %s2740
          %2746 = dma.vmem_to_hbm [thread:$0]  %s2741, 8192, %s2739, %s2727, 128, 128, 8
        $region52: #{tpu_custom_call.1} parent=47 // pred_fallthru
          _
      $region48: #{tpu_custom_call.1} parent=5 // pred_fallthru
        _
      %p2747 = scmp.le.s32.totalorder 2, %s16
      // Predicated region
      $region53: #{tpu_custom_call.1} parent=5 // pred_check
        %p2748 = pneg %p2747
      $region54: #{tpu_custom_call.1} parent=5 // pred_check_branch
        %2750 = sbr.rel (%p2748) target = $region56
      $region55: #{tpu_custom_call.1} parent=5 // pred_region
        %s2751 = ssub.s32 %s16, 2
        // Predicated region
        $region57: #{tpu_custom_call.1} parent=55 // pred_check
          %p2752 = pneg %p197
        $region58: #{tpu_custom_call.1} parent=55 // pred_check_branch
          %2754 = sbr.rel (%p2752) target = $region60
        $region59: #{tpu_custom_call.1} parent=55 // pred_region
          %s2755 = sand.u32 %s182, 1
          %s2756 = scalar_lea.sflag [#allocation3], %s2755
          %s2757 = sand.u32 %s182, 1
          %s2758 = smul.addr %s2757, 512
          %s2759 = scalar_lea.vmem [#allocation2], %s2758
          %2760 = dma.done %s2756, 8192
        $region60: #{tpu_custom_call.1} parent=55 // pred_fallthru
          _
      $region56: #{tpu_custom_call.1} parent=5 // pred_fallthru
        _
    $region6: #{tpu_custom_call.1} parent=1 // loop_footer
      %s20 = sadd.s32 1, %s16
    $region7: #{tpu_custom_call.1} parent=1 // loop_footer_branch
      %15 = sbr.rel target = $region3
    $region8: #{tpu_custom_call.1} parent=1 // loop_exit
      _
    %2761 = vsyncpa [#allocation3], 1
    %s2762 = scalar_lea.sflag [#allocation3], 1
    %2763 = vsyncpa %s2762, 1

</llo_original>
